<compile_context>
chip_gen: v7x
topology: tpu7x:2x2x1
jax: 0.10.0
libtpu: 0.0.40
codegen_flags: <defaults>
</compile_context>

<pallas_src>
import functools

import jax
import jax.numpy as jnp
from jax import lax
from jax.experimental import pallas as pl
from jax.experimental.pallas import tpu as pltpu


def _round_up(x, m):
    return (x + m - 1) // m * m


def _diversity_kernel(conf_ref, pp_ref, *, inv_temp, m_total, tile_m,
                      steps_per_chunk, need_mask):
    """One (tile_m, K) tile: softmax over K, accumulate per-class prob sums."""
    p = pl.program_id(0)   # parallel chunk
    i = pl.program_id(1)   # reduction step within chunk

    # In-kernel upcast: stream native dtype from HBM, cast on the VPU (free).
    logits = conf_ref[...].astype(jnp.float32) * inv_temp     # (TM, K)
    lmax = jnp.max(logits, axis=-1, keepdims=True)            # XLU reduce
    ex = jnp.exp(logits - lmax)                               # EUP
    denom = jnp.sum(ex, axis=-1, keepdims=True)               # XLU reduce
    probs = ex / denom                                        # exact normalize

    if need_mask:
        # Rows at/after m_total (trailing partial block or duplicated clamped
        # block) contribute zero.  (tile_m, 1) column mask, broadcast in the
        # select; select (not multiply) so garbage/NaN rows cannot propagate.
        start = (p * steps_per_chunk + i) * tile_m
        row = lax.broadcasted_iota(jnp.int32, (tile_m, 1), 0) + start
        probs = jnp.where(row < m_total, probs, 0.0)

    # TODO(synk): on v7x, if a bundle dump shows XLU/VPU saturating instead of
    # DMA, compute these reductions on the idle MXU (ones @ probs).
    pp_tile = jnp.sum(probs, axis=0, keepdims=True)           # (1, K)

    @pl.when(i == 0)
    def _():
        pp_ref[...] = jnp.zeros_like(pp_ref)

    pp_ref[...] = pp_ref[...] + pp_tile[None]                 # (1, 1, K)


@functools.partial(jax.jit, static_argnames=("temperature", "target_tile_bytes"))
def diversity_loss(confidence, temperature=0.9, target_tile_bytes=4 * 1024 * 1024):
    """confidence: (M, K) float array -> scalar entropy loss (f32)."""
    M, K = confidence.shape
    itemsize = jnp.dtype(confidence.dtype).itemsize
    sublane = max(8, 32 // itemsize)        # 8 for f32, 16 for bf16, 32 for int8

    # Byte-targeted tile over the point axis M (keeps per-step overhead small
    # while 2x double-buffered footprint stays well under every chip's VMEM).
    tm = max(sublane, (target_tile_bytes // (itemsize * K)) // sublane * sublane)
    tm = min(tm, _round_up(M, sublane))

    num_blocks = pl.cdiv(M, tm)
    if num_blocks >= 2:
        # Always give both v7x TensorCores work; odd block counts are covered
        # by clamping the block index and masking the duplicated block.
        num_par = 2
        steps = pl.cdiv(num_blocks, num_par)
    else:
        num_par = 1
        steps = num_blocks

    # Mask needed if the grid covers more rows than exist (ragged trailing
    # block and/or duplicated clamped block).
    need_mask = (num_par * steps * tm) > M

    kernel = functools.partial(
        _diversity_kernel,
        inv_temp=1.0 / float(temperature),
        m_total=M,
        tile_m=tm,
        steps_per_chunk=steps,
        need_mask=need_mask,
    )

    def in_index_map(p, i):
        # Clamp so the DMA never reads past the last (possibly partial) block;
        # the duplicated block's contribution is zeroed by the row mask.
        return (jnp.minimum(p * steps + i, num_blocks - 1), 0)

    pp = pl.pallas_call(
        kernel,
        out_shape=jax.ShapeDtypeStruct((num_par, 1, K), jnp.float32),
        grid_spec=pltpu.PrefetchScalarGridSpec(
            num_scalar_prefetch=0,
            grid=(num_par, steps),
            in_specs=[pl.BlockSpec((tm, K), in_index_map)],
            out_specs=pl.BlockSpec((1, 1, K), lambda p, i: (p, 0, 0)),
        ),
        compiler_params=pltpu.CompilerParams(
            dimension_semantics=("parallel", "arbitrary"),
            vmem_limit_bytes=32 * 1024 * 1024),
    )(confidence)

    class_probs = jnp.sum(pp, axis=(0, 1)) / M                # (K,)
    return jnp.sum(class_probs * jnp.log(class_probs + 1e-6))


def _reference_diversity_loss(confidence, temperature=0.9):
    """Plain-JAX replica of the PyTorch DiversityLoss.forward, for checking."""
    conf = confidence.astype(jnp.float32)
    point_probs = jax.nn.softmax(conf / temperature, axis=1)
    class_probs = jnp.mean(point_probs, axis=0)
    return jnp.sum(class_probs * jnp.log(class_probs + 1e-6))


if __name__ == "__main__":
    key = jax.random.PRNGKey(0)
    k1, k2, k3 = jax.random.split(key, 3)

    # confidence: (num_points, codebook_size)  -- e.g. B*N points vs K codes
    M, K = 1024, 256
    conf = jax.random.normal(k1, (M, K), jnp.float32) * 3.0
    out = jax.block_until_ready(diversity_loss(conf, temperature=0.9))
    ref = _reference_diversity_loss(conf, temperature=0.9)
    assert jnp.allclose(out, ref, atol=1e-2, rtol=1e-3), (out, ref)

    # ragged point count + bf16 input (exercises in-kernel cast + row mask,
    # no wrapper pad / cast)
    M2 = 1000
    conf2 = (jax.random.normal(k2, (M2, K), jnp.float32) * 3.0).astype(jnp.bfloat16)
    out2 = jax.block_until_ready(diversity_loss(conf2, temperature=0.9))
    ref2 = _reference_diversity_loss(conf2, temperature=0.9)
    assert jnp.allclose(out2, ref2, atol=1e-2, rtol=1e-3), (out2, ref2)

    # multi-block + odd block count (exercises the 2-chunk parallel axis with
    # a clamped, fully-masked duplicate block and a partial trailing block)
    M3 = 300
    conf3 = jax.random.normal(k3, (M3, K), jnp.float32) * 3.0
    out3 = jax.block_until_ready(
        diversity_loss(conf3, temperature=0.9, target_tile_bytes=64 * 1024))
    ref3 = _reference_diversity_loss(conf3, temperature=0.9)
    assert jnp.allclose(out3, ref3, atol=1e-2, rtol=1e-3), (out3, ref3)

    print("KERNEL_OK")
</pallas_src>

<mosaic_0001>
module attributes {stable_mosaic.version = 11 : i64} {
  func.func @_diversity_kernel(%arg0: i32, %arg1: i32, %arg2: memref<1024x256xf32, #tpu.memory_space<vmem>>, %arg3: memref<1x1x256xf32, #tpu.memory_space<vmem>>) attributes {dimension_semantics = [#tpu.dimension_semantics<parallel>, #tpu.dimension_semantics<arbitrary>], iteration_bounds = array<i64: 1, 1>, scalar_prefetch = 0 : i64, scratch_operands = 0 : i64, tpu.core_type = #tpu.core_type<tc>, window_params = [{transform_indices = @transform_0, window_bounds = array<i64: 1024, 256>}, {transform_indices = @transform_1, window_bounds = array<i64: 1, 1, 256>}]} {
    %c0 = arith.constant 0 : index
    %c0_0 = arith.constant 0 : index
    %0 = vector.load %arg2[%c0, %c0_0] : memref<1024x256xf32, #tpu.memory_space<vmem>>, vector<1024x256xf32>
    %cst = arith.constant 1.11111116 : f32
    %1 = vector.broadcast %cst : f32 to vector<1024x256xf32>
    %2 = arith.mulf %0, %1 : vector<1024x256xf32>
    %cst_1 = arith.constant dense<0xFF800000> : vector<1024xf32>
    %3 = vector.multi_reduction <maximumf>, %2, %cst_1 [1] : vector<1024x256xf32> to vector<1024xf32>
    %4 = vector.shape_cast %3 : vector<1024xf32> to vector<1024x1xf32>
    %5 = vector.broadcast %4 : vector<1024x1xf32> to vector<1024x256xf32>
    %6 = arith.subf %2, %5 : vector<1024x256xf32>
    %7 = math.exp %6 : vector<1024x256xf32>
    %cst_2 = arith.constant dense<0.000000e+00> : vector<1024xf32>
    %8 = vector.multi_reduction <add>, %7, %cst_2 [1] : vector<1024x256xf32> to vector<1024xf32>
    %9 = vector.shape_cast %8 : vector<1024xf32> to vector<1024x1xf32>
    %10 = vector.broadcast %9 : vector<1024x1xf32> to vector<1024x256xf32>
    %11 = arith.divf %7, %10 : vector<1024x256xf32>
    %cst_3 = arith.constant dense<0.000000e+00> : vector<256xf32>
    %12 = vector.multi_reduction <add>, %11, %cst_3 [0] : vector<1024x256xf32> to vector<256xf32>
    %13 = vector.shape_cast %12 : vector<256xf32> to vector<1x256xf32>
    %c0_i32 = arith.constant 0 : i32
    %14 = arith.cmpi eq, %arg1, %c0_i32 : i32
    %15 = arith.extui %14 : i1 to i32
    %c0_i32_4 = arith.constant 0 : i32
    %16 = arith.cmpi ne, %15, %c0_i32_4 : i32
    scf.if %16 {
      %cst_11 = arith.constant 0.000000e+00 : f32
      %21 = vector.broadcast %cst_11 : f32 to vector<1x1x256xf32>
      %c0_12 = arith.constant 0 : index
      %c0_13 = arith.constant 0 : index
      %c0_14 = arith.constant 0 : index
      %22 = vector.load %arg3[%c0_12, %c0_13, %c0_14] : memref<1x1x256xf32, #tpu.memory_space<vmem>>, vector<1x1x256xf32>
      tpu.vector_store %arg3[%c0_12, %c0_13, %c0_14], %21 {strides = array<i32>} : memref<1x1x256xf32, #tpu.memory_space<vmem>>, vector<1x1x256xf32>,
    } else {
    }
    %c0_5 = arith.constant 0 : index
    %c0_6 = arith.constant 0 : index
    %c0_7 = arith.constant 0 : index
    %17 = vector.load %arg3[%c0_5, %c0_6, %c0_7] : memref<1x1x256xf32, #tpu.memory_space<vmem>>, vector<1x1x256xf32>
    %18 = vector.shape_cast %13 : vector<1x256xf32> to vector<1x1x256xf32>
    %19 = arith.addf %17, %18 : vector<1x1x256xf32>
    %c0_8 = arith.constant 0 : index
    %c0_9 = arith.constant 0 : index
    %c0_10 = arith.constant 0 : index
    %20 = vector.load %arg3[%c0_8, %c0_9, %c0_10] : memref<1x1x256xf32, #tpu.memory_space<vmem>>, vector<1x1x256xf32>
    tpu.vector_store %arg3[%c0_8, %c0_9, %c0_10], %19 {strides = array<i32>} : memref<1x1x256xf32, #tpu.memory_space<vmem>>, vector<1x1x256xf32>,
    return
  }
  func.func @transform_0(%arg0: i32, %arg1: i32) -> (i32, i32) {
    %c1_i32 = arith.constant 1 : i32
    %0 = arith.muli %arg0, %c1_i32 : i32
    %1 = arith.addi %0, %arg1 : i32
    %c0_i32 = arith.constant 0 : i32
    %2 = arith.minsi %1, %c0_i32 : i32
    %c0_i32_0 = arith.constant 0 : i32
    %c0_i32_1 = arith.constant 0 : i32
    return %2, %c0_i32_0 : i32, i32
  }
  func.func @transform_1(%arg0: i32, %arg1: i32) -> (i32, i32, i32) {
    %c0_i32 = arith.constant 0 : i32
    %c0_i32_0 = arith.constant 0 : i32
    %c0_i32_1 = arith.constant 0 : i32
    return %arg0, %c0_i32, %c0_i32_0 : i32, i32, i32
  }
}

</mosaic_0001>

<llo_original>
// kernel: diversity_loss.1
$region0: #{diversity_loss.1}
  #allocation0 [shape = 'u32[]', space=smem, size = 0x4, offset = 0x4, fixed_abs, tag = 'smem constant byte address 0x4 - core index']
  #allocation1 [shape = 'u32[144,128]{1,0:T(1,128)}', space=vmem, size = 0x12000, scoped, tag = 'internal scratch']
  %s0 = inlined_call_operand.hbm [shape: f32[1024,256], index: 0, kind: input, shape index: {}]
  %s1 = inlined_call_operand.vmem [shape: f32[1,1,256], index: 1, kind: output, shape index: {}]
  %s2 = sld [smem:[#allocation0]]
  $region22: #{diversity_loss.1} parent=0
    _
  %s4 = ssub.s32 1, %s2
  %s5 = scalar_select 0, %s4, %s2
  $region1: #{diversity_loss.1} parent=0
    #allocation2 [shape = 'u8[1048576]{0}', space=vmem, size = 0x100000, scoped, tag = 'input window, operand 0, single buffered']
    #allocation3 [shape = 's32[1]{0}', space=sflag, size = 0x4, scoped, tag = 'scoped memory for diversity_loss.1']
    %6 = vsyncpa [#allocation3], 0
    // Predicated region
    $region2: #{diversity_loss.1} parent=1 // pred_check
      _
    $region3: #{diversity_loss.1} parent=1 // pred_check_branch
      %8 = sbr.rel (0) target = $region5
    $region4: #{diversity_loss.1} parent=1 // pred_region
      %s9 = sadd.s32 0, 0
      %p10 = scmp.lt.s32.totalorder %s9, 0
      %s11 = scalar_select %p10, %s9, 0
      %s12 = smul.u32 128, %s11
      %s14 = ssub.s32 32768, 32768
      %15 = vsyncadd [#allocation3], %s14
      %s16 = smul.addr %s12, 2
      %s17 = smul.addr %s16, 128
      %s18 = scalar_lea.hbm %s0, %s17
      %s19 = sshll.u32 [#allocation2], 4
      %s20 = int_to_ptr.vmem [resolvable:$true] %s19
      %25 = dma.hbm_to_vmem [thread:$0]  %s18, 32768, %s20, [#allocation3], 256, 256, 16
    $region5: #{diversity_loss.1} parent=1 // pred_fallthru
      _
    // Predicated region
    $region6: #{diversity_loss.1} parent=1 // pred_check
      _
    $region7: #{diversity_loss.1} parent=1 // pred_check_branch
      %27 = sbr.rel (0) target = $region9
    $region8: #{diversity_loss.1} parent=1 // pred_region
      %28 = dma.done [#allocation3], 32768
    $region9: #{diversity_loss.1} parent=1 // pred_fallthru
      _
    %s29 = sadd.s32 0, 0
    %p30 = scmp.lt.s32.totalorder %s29, 0
    %s31 = scalar_select %p30, %s29, 0
    %s32 = smul.u32 128, %s31
    %v33 = vld [vmem:[#allocation2] sm:$0xff]
    %v34 = vld [vmem:[#allocation2 + $0x8] sm:$0xff]
    %v35 = vld [vmem:[#allocation2 + $0x10] sm:$0xff]
    %v36 = vld [vmem:[#allocation2 + $0x18] sm:$0xff]
    %v37 = vld [vmem:[#allocation2 + $0x20] sm:$0xff]
    %v38 = vld [vmem:[#allocation2 + $0x28] sm:$0xff]
    %v39 = vld [vmem:[#allocation2 + $0x30] sm:$0xff]
    %v40 = vld [vmem:[#allocation2 + $0x38] sm:$0xff]
    %v41 = vld [vmem:[#allocation2 + $0x40] sm:$0xff]
    %v42 = vld [vmem:[#allocation2 + $0x48] sm:$0xff]
    %v43 = vld [vmem:[#allocation2 + $0x50] sm:$0xff]
    %v44 = vld [vmem:[#allocation2 + $0x58] sm:$0xff]
    %v45 = vld [vmem:[#allocation2 + $0x60] sm:$0xff]
    %v46 = vld [vmem:[#allocation2 + $0x68] sm:$0xff]
    %v47 = vld [vmem:[#allocation2 + $0x70] sm:$0xff]
    %v48 = vld [vmem:[#allocation2 + $0x78] sm:$0xff]
    %v49 = vld [vmem:[#allocation2 + $0x80] sm:$0xff]
    %v50 = vld [vmem:[#allocation2 + $0x88] sm:$0xff]
    %v51 = vld [vmem:[#allocation2 + $0x90] sm:$0xff]
    %v52 = vld [vmem:[#allocation2 + $0x98] sm:$0xff]
    %v53 = vld [vmem:[#allocation2 + $0xa0] sm:$0xff]
    %v54 = vld [vmem:[#allocation2 + $0xa8] sm:$0xff]
    %v55 = vld [vmem:[#allocation2 + $0xb0] sm:$0xff]
    %v56 = vld [vmem:[#allocation2 + $0xb8] sm:$0xff]
    %v57 = vld [vmem:[#allocation2 + $0xc0] sm:$0xff]
    %v58 = vld [vmem:[#allocation2 + $0xc8] sm:$0xff]
    %v59 = vld [vmem:[#allocation2 + $0xd0] sm:$0xff]
    %v60 = vld [vmem:[#allocation2 + $0xd8] sm:$0xff]
    %v61 = vld [vmem:[#allocation2 + $0xe0] sm:$0xff]
    %v62 = vld [vmem:[#allocation2 + $0xe8] sm:$0xff]
    %v63 = vld [vmem:[#allocation2 + $0xf0] sm:$0xff]
    %v64 = vld [vmem:[#allocation2 + $0xf8] sm:$0xff]
    %v65 = vld [vmem:[#allocation2 + $0x100] sm:$0xff]
    %v66 = vld [vmem:[#allocation2 + $0x108] sm:$0xff]
    %v67 = vld [vmem:[#allocation2 + $0x110] sm:$0xff]
    %v68 = vld [vmem:[#allocation2 + $0x118] sm:$0xff]
    %v69 = vld [vmem:[#allocation2 + $0x120] sm:$0xff]
    %v70 = vld [vmem:[#allocation2 + $0x128] sm:$0xff]
    %v71 = vld [vmem:[#allocation2 + $0x130] sm:$0xff]
    %v72 = vld [vmem:[#allocation2 + $0x138] sm:$0xff]
    %v73 = vld [vmem:[#allocation2 + $0x140] sm:$0xff]
    %v74 = vld [vmem:[#allocation2 + $0x148] sm:$0xff]
    %v75 = vld [vmem:[#allocation2 + $0x150] sm:$0xff]
    %v76 = vld [vmem:[#allocation2 + $0x158] sm:$0xff]
    %v77 = vld [vmem:[#allocation2 + $0x160] sm:$0xff]
    %v78 = vld [vmem:[#allocation2 + $0x168] sm:$0xff]
    %v79 = vld [vmem:[#allocation2 + $0x170] sm:$0xff]
    %v80 = vld [vmem:[#allocation2 + $0x178] sm:$0xff]
    %v81 = vld [vmem:[#allocation2 + $0x180] sm:$0xff]
    %v82 = vld [vmem:[#allocation2 + $0x188] sm:$0xff]
    %v83 = vld [vmem:[#allocation2 + $0x190] sm:$0xff]
    %v84 = vld [vmem:[#allocation2 + $0x198] sm:$0xff]
    %v85 = vld [vmem:[#allocation2 + $0x1a0] sm:$0xff]
    %v86 = vld [vmem:[#allocation2 + $0x1a8] sm:$0xff]
    %v87 = vld [vmem:[#allocation2 + $0x1b0] sm:$0xff]
    %v88 = vld [vmem:[#allocation2 + $0x1b8] sm:$0xff]
    %v89 = vld [vmem:[#allocation2 + $0x1c0] sm:$0xff]
    %v90 = vld [vmem:[#allocation2 + $0x1c8] sm:$0xff]
    %v91 = vld [vmem:[#allocation2 + $0x1d0] sm:$0xff]
    %v92 = vld [vmem:[#allocation2 + $0x1d8] sm:$0xff]
    %v93 = vld [vmem:[#allocation2 + $0x1e0] sm:$0xff]
    %v94 = vld [vmem:[#allocation2 + $0x1e8] sm:$0xff]
    %v95 = vld [vmem:[#allocation2 + $0x1f0] sm:$0xff]
    %v96 = vld [vmem:[#allocation2 + $0x1f8] sm:$0xff]
    %v97 = vld [vmem:[#allocation2 + $0x200] sm:$0xff]
    %v98 = vld [vmem:[#allocation2 + $0x208] sm:$0xff]
    %v99 = vld [vmem:[#allocation2 + $0x210] sm:$0xff]
    %v100 = vld [vmem:[#allocation2 + $0x218] sm:$0xff]
    %v101 = vld [vmem:[#allocation2 + $0x220] sm:$0xff]
    %v102 = vld [vmem:[#allocation2 + $0x228] sm:$0xff]
    %v103 = vld [vmem:[#allocation2 + $0x230] sm:$0xff]
    %v104 = vld [vmem:[#allocation2 + $0x238] sm:$0xff]
    %v105 = vld [vmem:[#allocation2 + $0x240] sm:$0xff]
    %v106 = vld [vmem:[#allocation2 + $0x248] sm:$0xff]
    %v107 = vld [vmem:[#allocation2 + $0x250] sm:$0xff]
    %v108 = vld [vmem:[#allocation2 + $0x258] sm:$0xff]
    %v109 = vld [vmem:[#allocation2 + $0x260] sm:$0xff]
    %v110 = vld [vmem:[#allocation2 + $0x268] sm:$0xff]
    %v111 = vld [vmem:[#allocation2 + $0x270] sm:$0xff]
    %v112 = vld [vmem:[#allocation2 + $0x278] sm:$0xff]
    %v113 = vld [vmem:[#allocation2 + $0x280] sm:$0xff]
    %v114 = vld [vmem:[#allocation2 + $0x288] sm:$0xff]
    %v115 = vld [vmem:[#allocation2 + $0x290] sm:$0xff]
    %v116 = vld [vmem:[#allocation2 + $0x298] sm:$0xff]
    %v117 = vld [vmem:[#allocation2 + $0x2a0] sm:$0xff]
    %v118 = vld [vmem:[#allocation2 + $0x2a8] sm:$0xff]
    %v119 = vld [vmem:[#allocation2 + $0x2b0] sm:$0xff]
    %v120 = vld [vmem:[#allocation2 + $0x2b8] sm:$0xff]
    %v121 = vld [vmem:[#allocation2 + $0x2c0] sm:$0xff]
    %v122 = vld [vmem:[#allocation2 + $0x2c8] sm:$0xff]
    %v123 = vld [vmem:[#allocation2 + $0x2d0] sm:$0xff]
    %v124 = vld [vmem:[#allocation2 + $0x2d8] sm:$0xff]
    %v125 = vld [vmem:[#allocation2 + $0x2e0] sm:$0xff]
    %v126 = vld [vmem:[#allocation2 + $0x2e8] sm:$0xff]
    %v127 = vld [vmem:[#allocation2 + $0x2f0] sm:$0xff]
    %v128 = vld [vmem:[#allocation2 + $0x2f8] sm:$0xff]
    %v129 = vld [vmem:[#allocation2 + $0x300] sm:$0xff]
    %v130 = vld [vmem:[#allocation2 + $0x308] sm:$0xff]
    %v131 = vld [vmem:[#allocation2 + $0x310] sm:$0xff]
    %v132 = vld [vmem:[#allocation2 + $0x318] sm:$0xff]
    %v133 = vld [vmem:[#allocation2 + $0x320] sm:$0xff]
    %v134 = vld [vmem:[#allocation2 + $0x328] sm:$0xff]
    %v135 = vld [vmem:[#allocation2 + $0x330] sm:$0xff]
    %v136 = vld [vmem:[#allocation2 + $0x338] sm:$0xff]
    %v137 = vld [vmem:[#allocation2 + $0x340] sm:$0xff]
    %v138 = vld [vmem:[#allocation2 + $0x348] sm:$0xff]
    %v139 = vld [vmem:[#allocation2 + $0x350] sm:$0xff]
    %v140 = vld [vmem:[#allocation2 + $0x358] sm:$0xff]
    %v141 = vld [vmem:[#allocation2 + $0x360] sm:$0xff]
    %v142 = vld [vmem:[#allocation2 + $0x368] sm:$0xff]
    %v143 = vld [vmem:[#allocation2 + $0x370] sm:$0xff]
    %v144 = vld [vmem:[#allocation2 + $0x378] sm:$0xff]
    %v145 = vld [vmem:[#allocation2 + $0x380] sm:$0xff]
    %v146 = vld [vmem:[#allocation2 + $0x388] sm:$0xff]
    %v147 = vld [vmem:[#allocation2 + $0x390] sm:$0xff]
    %v148 = vld [vmem:[#allocation2 + $0x398] sm:$0xff]
    %v149 = vld [vmem:[#allocation2 + $0x3a0] sm:$0xff]
    %v150 = vld [vmem:[#allocation2 + $0x3a8] sm:$0xff]
    %v151 = vld [vmem:[#allocation2 + $0x3b0] sm:$0xff]
    %v152 = vld [vmem:[#allocation2 + $0x3b8] sm:$0xff]
    %v153 = vld [vmem:[#allocation2 + $0x3c0] sm:$0xff]
    %v154 = vld [vmem:[#allocation2 + $0x3c8] sm:$0xff]
    %v155 = vld [vmem:[#allocation2 + $0x3d0] sm:$0xff]
    %v156 = vld [vmem:[#allocation2 + $0x3d8] sm:$0xff]
    %v157 = vld [vmem:[#allocation2 + $0x3e0] sm:$0xff]
    %v158 = vld [vmem:[#allocation2 + $0x3e8] sm:$0xff]
    %v159 = vld [vmem:[#allocation2 + $0x3f0] sm:$0xff]
    %v160 = vld [vmem:[#allocation2 + $0x3f8] sm:$0xff]
    %v161 = vld [vmem:[#allocation2 + $0x400] sm:$0xff]
    %v162 = vld [vmem:[#allocation2 + $0x408] sm:$0xff]
    %v163 = vld [vmem:[#allocation2 + $0x410] sm:$0xff]
    %v164 = vld [vmem:[#allocation2 + $0x418] sm:$0xff]
    %v165 = vld [vmem:[#allocation2 + $0x420] sm:$0xff]
    %v166 = vld [vmem:[#allocation2 + $0x428] sm:$0xff]
    %v167 = vld [vmem:[#allocation2 + $0x430] sm:$0xff]
    %v168 = vld [vmem:[#allocation2 + $0x438] sm:$0xff]
    %v169 = vld [vmem:[#allocation2 + $0x440] sm:$0xff]
    %v170 = vld [vmem:[#allocation2 + $0x448] sm:$0xff]
    %v171 = vld [vmem:[#allocation2 + $0x450] sm:$0xff]
    %v172 = vld [vmem:[#allocation2 + $0x458] sm:$0xff]
    %v173 = vld [vmem:[#allocation2 + $0x460] sm:$0xff]
    %v174 = vld [vmem:[#allocation2 + $0x468] sm:$0xff]
    %v175 = vld [vmem:[#allocation2 + $0x470] sm:$0xff]
    %v176 = vld [vmem:[#allocation2 + $0x478] sm:$0xff]
    %v177 = vld [vmem:[#allocation2 + $0x480] sm:$0xff]
    %v178 = vld [vmem:[#allocation2 + $0x488] sm:$0xff]
    %v179 = vld [vmem:[#allocation2 + $0x490] sm:$0xff]
    %v180 = vld [vmem:[#allocation2 + $0x498] sm:$0xff]
    %v181 = vld [vmem:[#allocation2 + $0x4a0] sm:$0xff]
    %v182 = vld [vmem:[#allocation2 + $0x4a8] sm:$0xff]
    %v183 = vld [vmem:[#allocation2 + $0x4b0] sm:$0xff]
    %v184 = vld [vmem:[#allocation2 + $0x4b8] sm:$0xff]
    %v185 = vld [vmem:[#allocation2 + $0x4c0] sm:$0xff]
    %v186 = vld [vmem:[#allocation2 + $0x4c8] sm:$0xff]
    %v187 = vld [vmem:[#allocation2 + $0x4d0] sm:$0xff]
    %v188 = vld [vmem:[#allocation2 + $0x4d8] sm:$0xff]
    %v189 = vld [vmem:[#allocation2 + $0x4e0] sm:$0xff]
    %v190 = vld [vmem:[#allocation2 + $0x4e8] sm:$0xff]
    %v191 = vld [vmem:[#allocation2 + $0x4f0] sm:$0xff]
    %v192 = vld [vmem:[#allocation2 + $0x4f8] sm:$0xff]
    %v193 = vld [vmem:[#allocation2 + $0x500] sm:$0xff]
    %v194 = vld [vmem:[#allocation2 + $0x508] sm:$0xff]
    %v195 = vld [vmem:[#allocation2 + $0x510] sm:$0xff]
    %v196 = vld [vmem:[#allocation2 + $0x518] sm:$0xff]
    %v197 = vld [vmem:[#allocation2 + $0x520] sm:$0xff]
    %v198 = vld [vmem:[#allocation2 + $0x528] sm:$0xff]
    %v199 = vld [vmem:[#allocation2 + $0x530] sm:$0xff]
    %v200 = vld [vmem:[#allocation2 + $0x538] sm:$0xff]
    %v201 = vld [vmem:[#allocation2 + $0x540] sm:$0xff]
    %v202 = vld [vmem:[#allocation2 + $0x548] sm:$0xff]
    %v203 = vld [vmem:[#allocation2 + $0x550] sm:$0xff]
    %v204 = vld [vmem:[#allocation2 + $0x558] sm:$0xff]
    %v205 = vld [vmem:[#allocation2 + $0x560] sm:$0xff]
    %v206 = vld [vmem:[#allocation2 + $0x568] sm:$0xff]
    %v207 = vld [vmem:[#allocation2 + $0x570] sm:$0xff]
    %v208 = vld [vmem:[#allocation2 + $0x578] sm:$0xff]
    %v209 = vld [vmem:[#allocation2 + $0x580] sm:$0xff]
    %v210 = vld [vmem:[#allocation2 + $0x588] sm:$0xff]
    %v211 = vld [vmem:[#allocation2 + $0x590] sm:$0xff]
    %v212 = vld [vmem:[#allocation2 + $0x598] sm:$0xff]
    %v213 = vld [vmem:[#allocation2 + $0x5a0] sm:$0xff]
    %v214 = vld [vmem:[#allocation2 + $0x5a8] sm:$0xff]
    %v215 = vld [vmem:[#allocation2 + $0x5b0] sm:$0xff]
    %v216 = vld [vmem:[#allocation2 + $0x5b8] sm:$0xff]
    %v217 = vld [vmem:[#allocation2 + $0x5c0] sm:$0xff]
    %v218 = vld [vmem:[#allocation2 + $0x5c8] sm:$0xff]
    %v219 = vld [vmem:[#allocation2 + $0x5d0] sm:$0xff]
    %v220 = vld [vmem:[#allocation2 + $0x5d8] sm:$0xff]
    %v221 = vld [vmem:[#allocation2 + $0x5e0] sm:$0xff]
    %v222 = vld [vmem:[#allocation2 + $0x5e8] sm:$0xff]
    %v223 = vld [vmem:[#allocation2 + $0x5f0] sm:$0xff]
    %v224 = vld [vmem:[#allocation2 + $0x5f8] sm:$0xff]
    %v225 = vld [vmem:[#allocation2 + $0x600] sm:$0xff]
    %v226 = vld [vmem:[#allocation2 + $0x608] sm:$0xff]
    %v227 = vld [vmem:[#allocation2 + $0x610] sm:$0xff]
    %v228 = vld [vmem:[#allocation2 + $0x618] sm:$0xff]
    %v229 = vld [vmem:[#allocation2 + $0x620] sm:$0xff]
    %v230 = vld [vmem:[#allocation2 + $0x628] sm:$0xff]
    %v231 = vld [vmem:[#allocation2 + $0x630] sm:$0xff]
    %v232 = vld [vmem:[#allocation2 + $0x638] sm:$0xff]
    %v233 = vld [vmem:[#allocation2 + $0x640] sm:$0xff]
    %v234 = vld [vmem:[#allocation2 + $0x648] sm:$0xff]
    %v235 = vld [vmem:[#allocation2 + $0x650] sm:$0xff]
    %v236 = vld [vmem:[#allocation2 + $0x658] sm:$0xff]
    %v237 = vld [vmem:[#allocation2 + $0x660] sm:$0xff]
    %v238 = vld [vmem:[#allocation2 + $0x668] sm:$0xff]
    %v239 = vld [vmem:[#allocation2 + $0x670] sm:$0xff]
    %v240 = vld [vmem:[#allocation2 + $0x678] sm:$0xff]
    %v241 = vld [vmem:[#allocation2 + $0x680] sm:$0xff]
    %v242 = vld [vmem:[#allocation2 + $0x688] sm:$0xff]
    %v243 = vld [vmem:[#allocation2 + $0x690] sm:$0xff]
    %v244 = vld [vmem:[#allocation2 + $0x698] sm:$0xff]
    %v245 = vld [vmem:[#allocation2 + $0x6a0] sm:$0xff]
    %v246 = vld [vmem:[#allocation2 + $0x6a8] sm:$0xff]
    %v247 = vld [vmem:[#allocation2 + $0x6b0] sm:$0xff]
    %v248 = vld [vmem:[#allocation2 + $0x6b8] sm:$0xff]
    %v249 = vld [vmem:[#allocation2 + $0x6c0] sm:$0xff]
    %v250 = vld [vmem:[#allocation2 + $0x6c8] sm:$0xff]
    %v251 = vld [vmem:[#allocation2 + $0x6d0] sm:$0xff]
    %v252 = vld [vmem:[#allocation2 + $0x6d8] sm:$0xff]
    %v253 = vld [vmem:[#allocation2 + $0x6e0] sm:$0xff]
    %v254 = vld [vmem:[#allocation2 + $0x6e8] sm:$0xff]
    %v255 = vld [vmem:[#allocation2 + $0x6f0] sm:$0xff]
    %v256 = vld [vmem:[#allocation2 + $0x6f8] sm:$0xff]
    %v257 = vld [vmem:[#allocation2 + $0x700] sm:$0xff]
    %v258 = vld [vmem:[#allocation2 + $0x708] sm:$0xff]
    %v259 = vld [vmem:[#allocation2 + $0x710] sm:$0xff]
    %v260 = vld [vmem:[#allocation2 + $0x718] sm:$0xff]
    %v261 = vld [vmem:[#allocation2 + $0x720] sm:$0xff]
    %v262 = vld [vmem:[#allocation2 + $0x728] sm:$0xff]
    %v263 = vld [vmem:[#allocation2 + $0x730] sm:$0xff]
    %v264 = vld [vmem:[#allocation2 + $0x738] sm:$0xff]
    %v265 = vld [vmem:[#allocation2 + $0x740] sm:$0xff]
    %v266 = vld [vmem:[#allocation2 + $0x748] sm:$0xff]
    %v267 = vld [vmem:[#allocation2 + $0x750] sm:$0xff]
    %v268 = vld [vmem:[#allocation2 + $0x758] sm:$0xff]
    %v269 = vld [vmem:[#allocation2 + $0x760] sm:$0xff]
    %v270 = vld [vmem:[#allocation2 + $0x768] sm:$0xff]
    %v271 = vld [vmem:[#allocation2 + $0x770] sm:$0xff]
    %v272 = vld [vmem:[#allocation2 + $0x778] sm:$0xff]
    %v273 = vld [vmem:[#allocation2 + $0x780] sm:$0xff]
    %v274 = vld [vmem:[#allocation2 + $0x788] sm:$0xff]
    %v275 = vld [vmem:[#allocation2 + $0x790] sm:$0xff]
    %v276 = vld [vmem:[#allocation2 + $0x798] sm:$0xff]
    %v277 = vld [vmem:[#allocation2 + $0x7a0] sm:$0xff]
    %v278 = vld [vmem:[#allocation2 + $0x7a8] sm:$0xff]
    %v279 = vld [vmem:[#allocation2 + $0x7b0] sm:$0xff]
    %v280 = vld [vmem:[#allocation2 + $0x7b8] sm:$0xff]
    %v281 = vld [vmem:[#allocation2 + $0x7c0] sm:$0xff]
    %v282 = vld [vmem:[#allocation2 + $0x7c8] sm:$0xff]
    %v283 = vld [vmem:[#allocation2 + $0x7d0] sm:$0xff]
    %v284 = vld [vmem:[#allocation2 + $0x7d8] sm:$0xff]
    %v285 = vld [vmem:[#allocation2 + $0x7e0] sm:$0xff]
    %v286 = vld [vmem:[#allocation2 + $0x7e8] sm:$0xff]
    %v287 = vld [vmem:[#allocation2 + $0x7f0] sm:$0xff]
    %v288 = vld [vmem:[#allocation2 + $0x7f8] sm:$0xff]
    %v289 = vmul.f32 %v33, 1.1111112
    %v290 = vmul.f32 %v34, 1.1111112
    %v291 = vmul.f32 %v35, 1.1111112
    %v292 = vmul.f32 %v36, 1.1111112
    %v293 = vmul.f32 %v37, 1.1111112
    %v294 = vmul.f32 %v38, 1.1111112
    %v295 = vmul.f32 %v39, 1.1111112
    %v296 = vmul.f32 %v40, 1.1111112
    %v297 = vmul.f32 %v41, 1.1111112
    %v298 = vmul.f32 %v42, 1.1111112
    %v299 = vmul.f32 %v43, 1.1111112
    %v300 = vmul.f32 %v44, 1.1111112
    %v301 = vmul.f32 %v45, 1.1111112
    %v302 = vmul.f32 %v46, 1.1111112
    %v303 = vmul.f32 %v47, 1.1111112
    %v304 = vmul.f32 %v48, 1.1111112
    %v305 = vmul.f32 %v49, 1.1111112
    %v306 = vmul.f32 %v50, 1.1111112
    %v307 = vmul.f32 %v51, 1.1111112
    %v308 = vmul.f32 %v52, 1.1111112
    %v309 = vmul.f32 %v53, 1.1111112
    %v310 = vmul.f32 %v54, 1.1111112
    %v311 = vmul.f32 %v55, 1.1111112
    %v312 = vmul.f32 %v56, 1.1111112
    %v313 = vmul.f32 %v57, 1.1111112
    %v314 = vmul.f32 %v58, 1.1111112
    %v315 = vmul.f32 %v59, 1.1111112
    %v316 = vmul.f32 %v60, 1.1111112
    %v317 = vmul.f32 %v61, 1.1111112
    %v318 = vmul.f32 %v62, 1.1111112
    %v319 = vmul.f32 %v63, 1.1111112
    %v320 = vmul.f32 %v64, 1.1111112
    %v321 = vmul.f32 %v65, 1.1111112
    %v322 = vmul.f32 %v66, 1.1111112
    %v323 = vmul.f32 %v67, 1.1111112
    %v324 = vmul.f32 %v68, 1.1111112
    %v325 = vmul.f32 %v69, 1.1111112
    %v326 = vmul.f32 %v70, 1.1111112
    %v327 = vmul.f32 %v71, 1.1111112
    %v328 = vmul.f32 %v72, 1.1111112
    %v329 = vmul.f32 %v73, 1.1111112
    %v330 = vmul.f32 %v74, 1.1111112
    %v331 = vmul.f32 %v75, 1.1111112
    %v332 = vmul.f32 %v76, 1.1111112
    %v333 = vmul.f32 %v77, 1.1111112
    %v334 = vmul.f32 %v78, 1.1111112
    %v335 = vmul.f32 %v79, 1.1111112
    %v336 = vmul.f32 %v80, 1.1111112
    %v337 = vmul.f32 %v81, 1.1111112
    %v338 = vmul.f32 %v82, 1.1111112
    %v339 = vmul.f32 %v83, 1.1111112
    %v340 = vmul.f32 %v84, 1.1111112
    %v341 = vmul.f32 %v85, 1.1111112
    %v342 = vmul.f32 %v86, 1.1111112
    %v343 = vmul.f32 %v87, 1.1111112
    %v344 = vmul.f32 %v88, 1.1111112
    %v345 = vmul.f32 %v89, 1.1111112
    %v346 = vmul.f32 %v90, 1.1111112
    %v347 = vmul.f32 %v91, 1.1111112
    %v348 = vmul.f32 %v92, 1.1111112
    %v349 = vmul.f32 %v93, 1.1111112
    %v350 = vmul.f32 %v94, 1.1111112
    %v351 = vmul.f32 %v95, 1.1111112
    %v352 = vmul.f32 %v96, 1.1111112
    %v353 = vmul.f32 %v97, 1.1111112
    %v354 = vmul.f32 %v98, 1.1111112
    %v355 = vmul.f32 %v99, 1.1111112
    %v356 = vmul.f32 %v100, 1.1111112
    %v357 = vmul.f32 %v101, 1.1111112
    %v358 = vmul.f32 %v102, 1.1111112
    %v359 = vmul.f32 %v103, 1.1111112
    %v360 = vmul.f32 %v104, 1.1111112
    %v361 = vmul.f32 %v105, 1.1111112
    %v362 = vmul.f32 %v106, 1.1111112
    %v363 = vmul.f32 %v107, 1.1111112
    %v364 = vmul.f32 %v108, 1.1111112
    %v365 = vmul.f32 %v109, 1.1111112
    %v366 = vmul.f32 %v110, 1.1111112
    %v367 = vmul.f32 %v111, 1.1111112
    %v368 = vmul.f32 %v112, 1.1111112
    %v369 = vmul.f32 %v113, 1.1111112
    %v370 = vmul.f32 %v114, 1.1111112
    %v371 = vmul.f32 %v115, 1.1111112
    %v372 = vmul.f32 %v116, 1.1111112
    %v373 = vmul.f32 %v117, 1.1111112
    %v374 = vmul.f32 %v118, 1.1111112
    %v375 = vmul.f32 %v119, 1.1111112
    %v376 = vmul.f32 %v120, 1.1111112
    %v377 = vmul.f32 %v121, 1.1111112
    %v378 = vmul.f32 %v122, 1.1111112
    %v379 = vmul.f32 %v123, 1.1111112
    %v380 = vmul.f32 %v124, 1.1111112
    %v381 = vmul.f32 %v125, 1.1111112
    %v382 = vmul.f32 %v126, 1.1111112
    %v383 = vmul.f32 %v127, 1.1111112
    %v384 = vmul.f32 %v128, 1.1111112
    %v385 = vmul.f32 %v129, 1.1111112
    %v386 = vmul.f32 %v130, 1.1111112
    %v387 = vmul.f32 %v131, 1.1111112
    %v388 = vmul.f32 %v132, 1.1111112
    %v389 = vmul.f32 %v133, 1.1111112
    %v390 = vmul.f32 %v134, 1.1111112
    %v391 = vmul.f32 %v135, 1.1111112
    %v392 = vmul.f32 %v136, 1.1111112
    %v393 = vmul.f32 %v137, 1.1111112
    %v394 = vmul.f32 %v138, 1.1111112
    %v395 = vmul.f32 %v139, 1.1111112
    %v396 = vmul.f32 %v140, 1.1111112
    %v397 = vmul.f32 %v141, 1.1111112
    %v398 = vmul.f32 %v142, 1.1111112
    %v399 = vmul.f32 %v143, 1.1111112
    %v400 = vmul.f32 %v144, 1.1111112
    %v401 = vmul.f32 %v145, 1.1111112
    %v402 = vmul.f32 %v146, 1.1111112
    %v403 = vmul.f32 %v147, 1.1111112
    %v404 = vmul.f32 %v148, 1.1111112
    %v405 = vmul.f32 %v149, 1.1111112
    %v406 = vmul.f32 %v150, 1.1111112
    %v407 = vmul.f32 %v151, 1.1111112
    %v408 = vmul.f32 %v152, 1.1111112
    %v409 = vmul.f32 %v153, 1.1111112
    %v410 = vmul.f32 %v154, 1.1111112
    %v411 = vmul.f32 %v155, 1.1111112
    %v412 = vmul.f32 %v156, 1.1111112
    %v413 = vmul.f32 %v157, 1.1111112
    %v414 = vmul.f32 %v158, 1.1111112
    %v415 = vmul.f32 %v159, 1.1111112
    %v416 = vmul.f32 %v160, 1.1111112
    %v417 = vmul.f32 %v161, 1.1111112
    %v418 = vmul.f32 %v162, 1.1111112
    %v419 = vmul.f32 %v163, 1.1111112
    %v420 = vmul.f32 %v164, 1.1111112
    %v421 = vmul.f32 %v165, 1.1111112
    %v422 = vmul.f32 %v166, 1.1111112
    %v423 = vmul.f32 %v167, 1.1111112
    %v424 = vmul.f32 %v168, 1.1111112
    %v425 = vmul.f32 %v169, 1.1111112
    %v426 = vmul.f32 %v170, 1.1111112
    %v427 = vmul.f32 %v171, 1.1111112
    %v428 = vmul.f32 %v172, 1.1111112
    %v429 = vmul.f32 %v173, 1.1111112
    %v430 = vmul.f32 %v174, 1.1111112
    %v431 = vmul.f32 %v175, 1.1111112
    %v432 = vmul.f32 %v176, 1.1111112
    %v433 = vmul.f32 %v177, 1.1111112
    %v434 = vmul.f32 %v178, 1.1111112
    %v435 = vmul.f32 %v179, 1.1111112
    %v436 = vmul.f32 %v180, 1.1111112
    %v437 = vmul.f32 %v181, 1.1111112
    %v438 = vmul.f32 %v182, 1.1111112
    %v439 = vmul.f32 %v183, 1.1111112
    %v440 = vmul.f32 %v184, 1.1111112
    %v441 = vmul.f32 %v185, 1.1111112
    %v442 = vmul.f32 %v186, 1.1111112
    %v443 = vmul.f32 %v187, 1.1111112
    %v444 = vmul.f32 %v188, 1.1111112
    %v445 = vmul.f32 %v189, 1.1111112
    %v446 = vmul.f32 %v190, 1.1111112
    %v447 = vmul.f32 %v191, 1.1111112
    %v448 = vmul.f32 %v192, 1.1111112
    %v449 = vmul.f32 %v193, 1.1111112
    %v450 = vmul.f32 %v194, 1.1111112
    %v451 = vmul.f32 %v195, 1.1111112
    %v452 = vmul.f32 %v196, 1.1111112
    %v453 = vmul.f32 %v197, 1.1111112
    %v454 = vmul.f32 %v198, 1.1111112
    %v455 = vmul.f32 %v199, 1.1111112
    %v456 = vmul.f32 %v200, 1.1111112
    %v457 = vmul.f32 %v201, 1.1111112
    %v458 = vmul.f32 %v202, 1.1111112
    %v459 = vmul.f32 %v203, 1.1111112
    %v460 = vmul.f32 %v204, 1.1111112
    %v461 = vmul.f32 %v205, 1.1111112
    %v462 = vmul.f32 %v206, 1.1111112
    %v463 = vmul.f32 %v207, 1.1111112
    %v464 = vmul.f32 %v208, 1.1111112
    %v465 = vmul.f32 %v209, 1.1111112
    %v466 = vmul.f32 %v210, 1.1111112
    %v467 = vmul.f32 %v211, 1.1111112
    %v468 = vmul.f32 %v212, 1.1111112
    %v469 = vmul.f32 %v213, 1.1111112
    %v470 = vmul.f32 %v214, 1.1111112
    %v471 = vmul.f32 %v215, 1.1111112
    %v472 = vmul.f32 %v216, 1.1111112
    %v473 = vmul.f32 %v217, 1.1111112
    %v474 = vmul.f32 %v218, 1.1111112
    %v475 = vmul.f32 %v219, 1.1111112
    %v476 = vmul.f32 %v220, 1.1111112
    %v477 = vmul.f32 %v221, 1.1111112
    %v478 = vmul.f32 %v222, 1.1111112
    %v479 = vmul.f32 %v223, 1.1111112
    %v480 = vmul.f32 %v224, 1.1111112
    %v481 = vmul.f32 %v225, 1.1111112
    %v482 = vmul.f32 %v226, 1.1111112
    %v483 = vmul.f32 %v227, 1.1111112
    %v484 = vmul.f32 %v228, 1.1111112
    %v485 = vmul.f32 %v229, 1.1111112
    %v486 = vmul.f32 %v230, 1.1111112
    %v487 = vmul.f32 %v231, 1.1111112
    %v488 = vmul.f32 %v232, 1.1111112
    %v489 = vmul.f32 %v233, 1.1111112
    %v490 = vmul.f32 %v234, 1.1111112
    %v491 = vmul.f32 %v235, 1.1111112
    %v492 = vmul.f32 %v236, 1.1111112
    %v493 = vmul.f32 %v237, 1.1111112
    %v494 = vmul.f32 %v238, 1.1111112
    %v495 = vmul.f32 %v239, 1.1111112
    %v496 = vmul.f32 %v240, 1.1111112
    %v497 = vmul.f32 %v241, 1.1111112
    %v498 = vmul.f32 %v242, 1.1111112
    %v499 = vmul.f32 %v243, 1.1111112
    %v500 = vmul.f32 %v244, 1.1111112
    %v501 = vmul.f32 %v245, 1.1111112
    %v502 = vmul.f32 %v246, 1.1111112
    %v503 = vmul.f32 %v247, 1.1111112
    %v504 = vmul.f32 %v248, 1.1111112
    %v505 = vmul.f32 %v249, 1.1111112
    %v506 = vmul.f32 %v250, 1.1111112
    %v507 = vmul.f32 %v251, 1.1111112
    %v508 = vmul.f32 %v252, 1.1111112
    %v509 = vmul.f32 %v253, 1.1111112
    %v510 = vmul.f32 %v254, 1.1111112
    %v511 = vmul.f32 %v255, 1.1111112
    %v512 = vmul.f32 %v256, 1.1111112
    %v513 = vmul.f32 %v257, 1.1111112
    %v514 = vmul.f32 %v258, 1.1111112
    %v515 = vmul.f32 %v259, 1.1111112
    %v516 = vmul.f32 %v260, 1.1111112
    %v517 = vmul.f32 %v261, 1.1111112
    %v518 = vmul.f32 %v262, 1.1111112
    %v519 = vmul.f32 %v263, 1.1111112
    %v520 = vmul.f32 %v264, 1.1111112
    %v521 = vmul.f32 %v265, 1.1111112
    %v522 = vmul.f32 %v266, 1.1111112
    %v523 = vmul.f32 %v267, 1.1111112
    %v524 = vmul.f32 %v268, 1.1111112
    %v525 = vmul.f32 %v269, 1.1111112
    %v526 = vmul.f32 %v270, 1.1111112
    %v527 = vmul.f32 %v271, 1.1111112
    %v528 = vmul.f32 %v272, 1.1111112
    %v529 = vmul.f32 %v273, 1.1111112
    %v530 = vmul.f32 %v274, 1.1111112
    %v531 = vmul.f32 %v275, 1.1111112
    %v532 = vmul.f32 %v276, 1.1111112
    %v533 = vmul.f32 %v277, 1.1111112
    %v534 = vmul.f32 %v278, 1.1111112
    %v535 = vmul.f32 %v279, 1.1111112
    %v536 = vmul.f32 %v280, 1.1111112
    %v537 = vmul.f32 %v281, 1.1111112
    %v538 = vmul.f32 %v282, 1.1111112
    %v539 = vmul.f32 %v283, 1.1111112
    %v540 = vmul.f32 %v284, 1.1111112
    %v541 = vmul.f32 %v285, 1.1111112
    %v542 = vmul.f32 %v286, 1.1111112
    %v543 = vmul.f32 %v287, 1.1111112
    %v544 = vmul.f32 %v288, 1.1111112
    %v545 = vmax.f32 %v289, %v290
    %546 = vmax.xlane.f32.xlu0 %v545
    %v547 = vpop.xlane.xlu0 %546
    %v548 = vmax.f32 %v291, %v292
    %549 = vmax.xlane.f32.xlu0 %v548
    %v550 = vpop.xlane.xlu0 %549
    %v551 = vmax.f32 %v293, %v294
    %552 = vmax.xlane.f32.xlu0 %v551
    %v553 = vpop.xlane.xlu0 %552
    %v554 = vmax.f32 %v295, %v296
    %555 = vmax.xlane.f32.xlu0 %v554
    %v556 = vpop.xlane.xlu0 %555
    %v557 = vmax.f32 %v297, %v298
    %558 = vmax.xlane.f32.xlu0 %v557
    %v559 = vpop.xlane.xlu0 %558
    %v560 = vmax.f32 %v299, %v300
    %561 = vmax.xlane.f32.xlu0 %v560
    %v562 = vpop.xlane.xlu0 %561
    %v563 = vmax.f32 %v301, %v302
    %564 = vmax.xlane.f32.xlu0 %v563
    %v565 = vpop.xlane.xlu0 %564
    %v566 = vmax.f32 %v303, %v304
    %567 = vmax.xlane.f32.xlu0 %v566
    %v568 = vpop.xlane.xlu0 %567
    %v569 = vmax.f32 %v305, %v306
    %570 = vmax.xlane.f32.xlu0 %v569
    %v571 = vpop.xlane.xlu0 %570
    %v572 = vmax.f32 %v307, %v308
    %573 = vmax.xlane.f32.xlu0 %v572
    %v574 = vpop.xlane.xlu0 %573
    %v575 = vmax.f32 %v309, %v310
    %576 = vmax.xlane.f32.xlu0 %v575
    %v577 = vpop.xlane.xlu0 %576
    %v578 = vmax.f32 %v311, %v312
    %579 = vmax.xlane.f32.xlu0 %v578
    %v580 = vpop.xlane.xlu0 %579
    %v581 = vmax.f32 %v313, %v314
    %582 = vmax.xlane.f32.xlu0 %v581
    %v583 = vpop.xlane.xlu0 %582
    %v584 = vmax.f32 %v315, %v316
    %585 = vmax.xlane.f32.xlu0 %v584
    %v586 = vpop.xlane.xlu0 %585
    %v587 = vmax.f32 %v317, %v318
    %588 = vmax.xlane.f32.xlu0 %v587
    %v589 = vpop.xlane.xlu0 %588
    %v590 = vmax.f32 %v319, %v320
    %591 = vmax.xlane.f32.xlu0 %v590
    %v592 = vpop.xlane.xlu0 %591
    %v593 = vmax.f32 %v321, %v322
    %594 = vmax.xlane.f32.xlu0 %v593
    %v595 = vpop.xlane.xlu0 %594
    %v596 = vmax.f32 %v323, %v324
    %597 = vmax.xlane.f32.xlu0 %v596
    %v598 = vpop.xlane.xlu0 %597
    %v599 = vmax.f32 %v325, %v326
    %600 = vmax.xlane.f32.xlu0 %v599
    %v601 = vpop.xlane.xlu0 %600
    %v602 = vmax.f32 %v327, %v328
    %603 = vmax.xlane.f32.xlu0 %v602
    %v604 = vpop.xlane.xlu0 %603
    %v605 = vmax.f32 %v329, %v330
    %606 = vmax.xlane.f32.xlu0 %v605
    %v607 = vpop.xlane.xlu0 %606
    %v608 = vmax.f32 %v331, %v332
    %609 = vmax.xlane.f32.xlu0 %v608
    %v610 = vpop.xlane.xlu0 %609
    %v611 = vmax.f32 %v333, %v334
    %612 = vmax.xlane.f32.xlu0 %v611
    %v613 = vpop.xlane.xlu0 %612
    %v614 = vmax.f32 %v335, %v336
    %615 = vmax.xlane.f32.xlu0 %v614
    %v616 = vpop.xlane.xlu0 %615
    %v617 = vmax.f32 %v337, %v338
    %618 = vmax.xlane.f32.xlu0 %v617
    %v619 = vpop.xlane.xlu0 %618
    %v620 = vmax.f32 %v339, %v340
    %621 = vmax.xlane.f32.xlu0 %v620
    %v622 = vpop.xlane.xlu0 %621
    %v623 = vmax.f32 %v341, %v342
    %624 = vmax.xlane.f32.xlu0 %v623
    %v625 = vpop.xlane.xlu0 %624
    %v626 = vmax.f32 %v343, %v344
    %627 = vmax.xlane.f32.xlu0 %v626
    %v628 = vpop.xlane.xlu0 %627
    %v629 = vmax.f32 %v345, %v346
    %630 = vmax.xlane.f32.xlu0 %v629
    %v631 = vpop.xlane.xlu0 %630
    %v632 = vmax.f32 %v347, %v348
    %633 = vmax.xlane.f32.xlu0 %v632
    %v634 = vpop.xlane.xlu0 %633
    %v635 = vmax.f32 %v349, %v350
    %636 = vmax.xlane.f32.xlu0 %v635
    %v637 = vpop.xlane.xlu0 %636
    %v638 = vmax.f32 %v351, %v352
    %639 = vmax.xlane.f32.xlu0 %v638
    %v640 = vpop.xlane.xlu0 %639
    %v641 = vmax.f32 %v353, %v354
    %642 = vmax.xlane.f32.xlu0 %v641
    %v643 = vpop.xlane.xlu0 %642
    %v644 = vmax.f32 %v355, %v356
    %645 = vmax.xlane.f32.xlu0 %v644
    %v646 = vpop.xlane.xlu0 %645
    %v647 = vmax.f32 %v357, %v358
    %648 = vmax.xlane.f32.xlu0 %v647
    %v649 = vpop.xlane.xlu0 %648
    %v650 = vmax.f32 %v359, %v360
    %651 = vmax.xlane.f32.xlu0 %v650
    %v652 = vpop.xlane.xlu0 %651
    %v653 = vmax.f32 %v361, %v362
    %654 = vmax.xlane.f32.xlu0 %v653
    %v655 = vpop.xlane.xlu0 %654
    %v656 = vmax.f32 %v363, %v364
    %657 = vmax.xlane.f32.xlu0 %v656
    %v658 = vpop.xlane.xlu0 %657
    %v659 = vmax.f32 %v365, %v366
    %660 = vmax.xlane.f32.xlu0 %v659
    %v661 = vpop.xlane.xlu0 %660
    %v662 = vmax.f32 %v367, %v368
    %663 = vmax.xlane.f32.xlu0 %v662
    %v664 = vpop.xlane.xlu0 %663
    %v665 = vmax.f32 %v369, %v370
    %666 = vmax.xlane.f32.xlu0 %v665
    %v667 = vpop.xlane.xlu0 %666
    %v668 = vmax.f32 %v371, %v372
    %669 = vmax.xlane.f32.xlu0 %v668
    %v670 = vpop.xlane.xlu0 %669
    %v671 = vmax.f32 %v373, %v374
    %672 = vmax.xlane.f32.xlu0 %v671
    %v673 = vpop.xlane.xlu0 %672
    %v674 = vmax.f32 %v375, %v376
    %675 = vmax.xlane.f32.xlu0 %v674
    %v676 = vpop.xlane.xlu0 %675
    %v677 = vmax.f32 %v377, %v378
    %678 = vmax.xlane.f32.xlu0 %v677
    %v679 = vpop.xlane.xlu0 %678
    %v680 = vmax.f32 %v379, %v380
    %681 = vmax.xlane.f32.xlu0 %v680
    %v682 = vpop.xlane.xlu0 %681
    %v683 = vmax.f32 %v381, %v382
    %684 = vmax.xlane.f32.xlu0 %v683
    %v685 = vpop.xlane.xlu0 %684
    %v686 = vmax.f32 %v383, %v384
    %687 = vmax.xlane.f32.xlu0 %v686
    %v688 = vpop.xlane.xlu0 %687
    %v689 = vmax.f32 %v385, %v386
    %690 = vmax.xlane.f32.xlu0 %v689
    %v691 = vpop.xlane.xlu0 %690
    %v692 = vmax.f32 %v387, %v388
    %693 = vmax.xlane.f32.xlu0 %v692
    %v694 = vpop.xlane.xlu0 %693
    %v695 = vmax.f32 %v389, %v390
    %696 = vmax.xlane.f32.xlu0 %v695
    %v697 = vpop.xlane.xlu0 %696
    %v698 = vmax.f32 %v391, %v392
    %699 = vmax.xlane.f32.xlu0 %v698
    %v700 = vpop.xlane.xlu0 %699
    %v701 = vmax.f32 %v393, %v394
    %702 = vmax.xlane.f32.xlu0 %v701
    %v703 = vpop.xlane.xlu0 %702
    %v704 = vmax.f32 %v395, %v396
    %705 = vmax.xlane.f32.xlu0 %v704
    %v706 = vpop.xlane.xlu0 %705
    %v707 = vmax.f32 %v397, %v398
    %708 = vmax.xlane.f32.xlu0 %v707
    %v709 = vpop.xlane.xlu0 %708
    %v710 = vmax.f32 %v399, %v400
    %711 = vmax.xlane.f32.xlu0 %v710
    %v712 = vpop.xlane.xlu0 %711
    %v713 = vmax.f32 %v401, %v402
    %714 = vmax.xlane.f32.xlu0 %v713
    %v715 = vpop.xlane.xlu0 %714
    %v716 = vmax.f32 %v403, %v404
    %717 = vmax.xlane.f32.xlu0 %v716
    %v718 = vpop.xlane.xlu0 %717
    %v719 = vmax.f32 %v405, %v406
    %720 = vmax.xlane.f32.xlu0 %v719
    %v721 = vpop.xlane.xlu0 %720
    %v722 = vmax.f32 %v407, %v408
    %723 = vmax.xlane.f32.xlu0 %v722
    %v724 = vpop.xlane.xlu0 %723
    %v725 = vmax.f32 %v409, %v410
    %726 = vmax.xlane.f32.xlu0 %v725
    %v727 = vpop.xlane.xlu0 %726
    %v728 = vmax.f32 %v411, %v412
    %729 = vmax.xlane.f32.xlu0 %v728
    %v730 = vpop.xlane.xlu0 %729
    %v731 = vmax.f32 %v413, %v414
    %732 = vmax.xlane.f32.xlu0 %v731
    %v733 = vpop.xlane.xlu0 %732
    %v734 = vmax.f32 %v415, %v416
    %735 = vmax.xlane.f32.xlu0 %v734
    %v736 = vpop.xlane.xlu0 %735
    %v737 = vmax.f32 %v417, %v418
    %738 = vmax.xlane.f32.xlu0 %v737
    %v739 = vpop.xlane.xlu0 %738
    %v740 = vmax.f32 %v419, %v420
    %741 = vmax.xlane.f32.xlu0 %v740
    %v742 = vpop.xlane.xlu0 %741
    %v743 = vmax.f32 %v421, %v422
    %744 = vmax.xlane.f32.xlu0 %v743
    %v745 = vpop.xlane.xlu0 %744
    %v746 = vmax.f32 %v423, %v424
    %747 = vmax.xlane.f32.xlu0 %v746
    %v748 = vpop.xlane.xlu0 %747
    %v749 = vmax.f32 %v425, %v426
    %750 = vmax.xlane.f32.xlu0 %v749
    %v751 = vpop.xlane.xlu0 %750
    %v752 = vmax.f32 %v427, %v428
    %753 = vmax.xlane.f32.xlu0 %v752
    %v754 = vpop.xlane.xlu0 %753
    %v755 = vmax.f32 %v429, %v430
    %756 = vmax.xlane.f32.xlu0 %v755
    %v757 = vpop.xlane.xlu0 %756
    %v758 = vmax.f32 %v431, %v432
    %759 = vmax.xlane.f32.xlu0 %v758
    %v760 = vpop.xlane.xlu0 %759
    %v761 = vmax.f32 %v433, %v434
    %762 = vmax.xlane.f32.xlu0 %v761
    %v763 = vpop.xlane.xlu0 %762
    %v764 = vmax.f32 %v435, %v436
    %765 = vmax.xlane.f32.xlu0 %v764
    %v766 = vpop.xlane.xlu0 %765
    %v767 = vmax.f32 %v437, %v438
    %768 = vmax.xlane.f32.xlu0 %v767
    %v769 = vpop.xlane.xlu0 %768
    %v770 = vmax.f32 %v439, %v440
    %771 = vmax.xlane.f32.xlu0 %v770
    %v772 = vpop.xlane.xlu0 %771
    %v773 = vmax.f32 %v441, %v442
    %774 = vmax.xlane.f32.xlu0 %v773
    %v775 = vpop.xlane.xlu0 %774
    %v776 = vmax.f32 %v443, %v444
    %777 = vmax.xlane.f32.xlu0 %v776
    %v778 = vpop.xlane.xlu0 %777
    %v779 = vmax.f32 %v445, %v446
    %780 = vmax.xlane.f32.xlu0 %v779
    %v781 = vpop.xlane.xlu0 %780
    %v782 = vmax.f32 %v447, %v448
    %783 = vmax.xlane.f32.xlu0 %v782
    %v784 = vpop.xlane.xlu0 %783
    %v785 = vmax.f32 %v449, %v450
    %786 = vmax.xlane.f32.xlu0 %v785
    %v787 = vpop.xlane.xlu0 %786
    %v788 = vmax.f32 %v451, %v452
    %789 = vmax.xlane.f32.xlu0 %v788
    %v790 = vpop.xlane.xlu0 %789
    %v791 = vmax.f32 %v453, %v454
    %792 = vmax.xlane.f32.xlu0 %v791
    %v793 = vpop.xlane.xlu0 %792
    %v794 = vmax.f32 %v455, %v456
    %795 = vmax.xlane.f32.xlu0 %v794
    %v796 = vpop.xlane.xlu0 %795
    %v797 = vmax.f32 %v457, %v458
    %798 = vmax.xlane.f32.xlu0 %v797
    %v799 = vpop.xlane.xlu0 %798
    %v800 = vmax.f32 %v459, %v460
    %801 = vmax.xlane.f32.xlu0 %v800
    %v802 = vpop.xlane.xlu0 %801
    %v803 = vmax.f32 %v461, %v462
    %804 = vmax.xlane.f32.xlu0 %v803
    %v805 = vpop.xlane.xlu0 %804
    %v806 = vmax.f32 %v463, %v464
    %807 = vmax.xlane.f32.xlu0 %v806
    %v808 = vpop.xlane.xlu0 %807
    %v809 = vmax.f32 %v465, %v466
    %810 = vmax.xlane.f32.xlu0 %v809
    %v811 = vpop.xlane.xlu0 %810
    %v812 = vmax.f32 %v467, %v468
    %813 = vmax.xlane.f32.xlu0 %v812
    %v814 = vpop.xlane.xlu0 %813
    %v815 = vmax.f32 %v469, %v470
    %816 = vmax.xlane.f32.xlu0 %v815
    %v817 = vpop.xlane.xlu0 %816
    %v818 = vmax.f32 %v471, %v472
    %819 = vmax.xlane.f32.xlu0 %v818
    %v820 = vpop.xlane.xlu0 %819
    %v821 = vmax.f32 %v473, %v474
    %822 = vmax.xlane.f32.xlu0 %v821
    %v823 = vpop.xlane.xlu0 %822
    %v824 = vmax.f32 %v475, %v476
    %825 = vmax.xlane.f32.xlu0 %v824
    %v826 = vpop.xlane.xlu0 %825
    %v827 = vmax.f32 %v477, %v478
    %828 = vmax.xlane.f32.xlu0 %v827
    %v829 = vpop.xlane.xlu0 %828
    %v830 = vmax.f32 %v479, %v480
    %831 = vmax.xlane.f32.xlu0 %v830
    %v832 = vpop.xlane.xlu0 %831
    %v833 = vmax.f32 %v481, %v482
    %834 = vmax.xlane.f32.xlu0 %v833
    %v835 = vpop.xlane.xlu0 %834
    %v836 = vmax.f32 %v483, %v484
    %837 = vmax.xlane.f32.xlu0 %v836
    %v838 = vpop.xlane.xlu0 %837
    %v839 = vmax.f32 %v485, %v486
    %840 = vmax.xlane.f32.xlu0 %v839
    %v841 = vpop.xlane.xlu0 %840
    %v842 = vmax.f32 %v487, %v488
    %843 = vmax.xlane.f32.xlu0 %v842
    %v844 = vpop.xlane.xlu0 %843
    %v845 = vmax.f32 %v489, %v490
    %846 = vmax.xlane.f32.xlu0 %v845
    %v847 = vpop.xlane.xlu0 %846
    %v848 = vmax.f32 %v491, %v492
    %849 = vmax.xlane.f32.xlu0 %v848
    %v850 = vpop.xlane.xlu0 %849
    %v851 = vmax.f32 %v493, %v494
    %852 = vmax.xlane.f32.xlu0 %v851
    %v853 = vpop.xlane.xlu0 %852
    %v854 = vmax.f32 %v495, %v496
    %855 = vmax.xlane.f32.xlu0 %v854
    %v856 = vpop.xlane.xlu0 %855
    %v857 = vmax.f32 %v497, %v498
    %858 = vmax.xlane.f32.xlu0 %v857
    %v859 = vpop.xlane.xlu0 %858
    %v860 = vmax.f32 %v499, %v500
    %861 = vmax.xlane.f32.xlu0 %v860
    %v862 = vpop.xlane.xlu0 %861
    %v863 = vmax.f32 %v501, %v502
    %864 = vmax.xlane.f32.xlu0 %v863
    %v865 = vpop.xlane.xlu0 %864
    %v866 = vmax.f32 %v503, %v504
    %867 = vmax.xlane.f32.xlu0 %v866
    %v868 = vpop.xlane.xlu0 %867
    %v869 = vmax.f32 %v505, %v506
    %870 = vmax.xlane.f32.xlu0 %v869
    %v871 = vpop.xlane.xlu0 %870
    %v872 = vmax.f32 %v507, %v508
    %873 = vmax.xlane.f32.xlu0 %v872
    %v874 = vpop.xlane.xlu0 %873
    %v875 = vmax.f32 %v509, %v510
    %876 = vmax.xlane.f32.xlu0 %v875
    %v877 = vpop.xlane.xlu0 %876
    %v878 = vmax.f32 %v511, %v512
    %879 = vmax.xlane.f32.xlu0 %v878
    %v880 = vpop.xlane.xlu0 %879
    %v881 = vmax.f32 %v513, %v514
    %882 = vmax.xlane.f32.xlu0 %v881
    %v883 = vpop.xlane.xlu0 %882
    %v884 = vmax.f32 %v515, %v516
    %885 = vmax.xlane.f32.xlu0 %v884
    %v886 = vpop.xlane.xlu0 %885
    %v887 = vmax.f32 %v517, %v518
    %888 = vmax.xlane.f32.xlu0 %v887
    %v889 = vpop.xlane.xlu0 %888
    %v890 = vmax.f32 %v519, %v520
    %891 = vmax.xlane.f32.xlu0 %v890
    %v892 = vpop.xlane.xlu0 %891
    %v893 = vmax.f32 %v521, %v522
    %894 = vmax.xlane.f32.xlu0 %v893
    %v895 = vpop.xlane.xlu0 %894
    %v896 = vmax.f32 %v523, %v524
    %897 = vmax.xlane.f32.xlu0 %v896
    %v898 = vpop.xlane.xlu0 %897
    %v899 = vmax.f32 %v525, %v526
    %900 = vmax.xlane.f32.xlu0 %v899
    %v901 = vpop.xlane.xlu0 %900
    %v902 = vmax.f32 %v527, %v528
    %903 = vmax.xlane.f32.xlu0 %v902
    %v904 = vpop.xlane.xlu0 %903
    %v905 = vmax.f32 %v529, %v530
    %906 = vmax.xlane.f32.xlu0 %v905
    %v907 = vpop.xlane.xlu0 %906
    %v908 = vmax.f32 %v531, %v532
    %909 = vmax.xlane.f32.xlu0 %v908
    %v910 = vpop.xlane.xlu0 %909
    %v911 = vmax.f32 %v533, %v534
    %912 = vmax.xlane.f32.xlu0 %v911
    %v913 = vpop.xlane.xlu0 %912
    %v914 = vmax.f32 %v535, %v536
    %915 = vmax.xlane.f32.xlu0 %v914
    %v916 = vpop.xlane.xlu0 %915
    %v917 = vmax.f32 %v537, %v538
    %918 = vmax.xlane.f32.xlu0 %v917
    %v919 = vpop.xlane.xlu0 %918
    %v920 = vmax.f32 %v539, %v540
    %921 = vmax.xlane.f32.xlu0 %v920
    %v922 = vpop.xlane.xlu0 %921
    %v923 = vmax.f32 %v541, %v542
    %924 = vmax.xlane.f32.xlu0 %v923
    %v925 = vpop.xlane.xlu0 %924
    %v926 = vmax.f32 %v543, %v544
    %927 = vmax.xlane.f32.xlu0 %v926
    %v928 = vpop.xlane.xlu0 %927
    %v929 = vsub.f32 %v289, %v547
    %v930 = vsub.f32 %v290, %v547
    %v931 = vsub.f32 %v291, %v550
    %v932 = vsub.f32 %v292, %v550
    %v933 = vsub.f32 %v293, %v553
    %v934 = vsub.f32 %v294, %v553
    %v935 = vsub.f32 %v295, %v556
    %v936 = vsub.f32 %v296, %v556
    %v937 = vsub.f32 %v297, %v559
    %v938 = vsub.f32 %v298, %v559
    %v939 = vsub.f32 %v299, %v562
    %v940 = vsub.f32 %v300, %v562
    %v941 = vsub.f32 %v301, %v565
    %v942 = vsub.f32 %v302, %v565
    %v943 = vsub.f32 %v303, %v568
    %v944 = vsub.f32 %v304, %v568
    %v945 = vsub.f32 %v305, %v571
    %v946 = vsub.f32 %v306, %v571
    %v947 = vsub.f32 %v307, %v574
    %v948 = vsub.f32 %v308, %v574
    %v949 = vsub.f32 %v309, %v577
    %v950 = vsub.f32 %v310, %v577
    %v951 = vsub.f32 %v311, %v580
    %v952 = vsub.f32 %v312, %v580
    %v953 = vsub.f32 %v313, %v583
    %v954 = vsub.f32 %v314, %v583
    %v955 = vsub.f32 %v315, %v586
    %v956 = vsub.f32 %v316, %v586
    %v957 = vsub.f32 %v317, %v589
    %v958 = vsub.f32 %v318, %v589
    %v959 = vsub.f32 %v319, %v592
    %v960 = vsub.f32 %v320, %v592
    %v961 = vsub.f32 %v321, %v595
    %v962 = vsub.f32 %v322, %v595
    %v963 = vsub.f32 %v323, %v598
    %v964 = vsub.f32 %v324, %v598
    %v965 = vsub.f32 %v325, %v601
    %v966 = vsub.f32 %v326, %v601
    %v967 = vsub.f32 %v327, %v604
    %v968 = vsub.f32 %v328, %v604
    %v969 = vsub.f32 %v329, %v607
    %v970 = vsub.f32 %v330, %v607
    %v971 = vsub.f32 %v331, %v610
    %v972 = vsub.f32 %v332, %v610
    %v973 = vsub.f32 %v333, %v613
    %v974 = vsub.f32 %v334, %v613
    %v975 = vsub.f32 %v335, %v616
    %v976 = vsub.f32 %v336, %v616
    %v977 = vsub.f32 %v337, %v619
    %v978 = vsub.f32 %v338, %v619
    %v979 = vsub.f32 %v339, %v622
    %v980 = vsub.f32 %v340, %v622
    %v981 = vsub.f32 %v341, %v625
    %v982 = vsub.f32 %v342, %v625
    %v983 = vsub.f32 %v343, %v628
    %v984 = vsub.f32 %v344, %v628
    %v985 = vsub.f32 %v345, %v631
    %v986 = vsub.f32 %v346, %v631
    %v987 = vsub.f32 %v347, %v634
    %v988 = vsub.f32 %v348, %v634
    %v989 = vsub.f32 %v349, %v637
    %v990 = vsub.f32 %v350, %v637
    %v991 = vsub.f32 %v351, %v640
    %v992 = vsub.f32 %v352, %v640
    %v993 = vsub.f32 %v353, %v643
    %v994 = vsub.f32 %v354, %v643
    %v995 = vsub.f32 %v355, %v646
    %v996 = vsub.f32 %v356, %v646
    %v997 = vsub.f32 %v357, %v649
    %v998 = vsub.f32 %v358, %v649
    %v999 = vsub.f32 %v359, %v652
    %v1000 = vsub.f32 %v360, %v652
    %v1001 = vsub.f32 %v361, %v655
    %v1002 = vsub.f32 %v362, %v655
    %v1003 = vsub.f32 %v363, %v658
    %v1004 = vsub.f32 %v364, %v658
    %v1005 = vsub.f32 %v365, %v661
    %v1006 = vsub.f32 %v366, %v661
    %v1007 = vsub.f32 %v367, %v664
    %v1008 = vsub.f32 %v368, %v664
    %v1009 = vsub.f32 %v369, %v667
    %v1010 = vsub.f32 %v370, %v667
    %v1011 = vsub.f32 %v371, %v670
    %v1012 = vsub.f32 %v372, %v670
    %v1013 = vsub.f32 %v373, %v673
    %v1014 = vsub.f32 %v374, %v673
    %v1015 = vsub.f32 %v375, %v676
    %v1016 = vsub.f32 %v376, %v676
    %v1017 = vsub.f32 %v377, %v679
    %v1018 = vsub.f32 %v378, %v679
    %v1019 = vsub.f32 %v379, %v682
    %v1020 = vsub.f32 %v380, %v682
    %v1021 = vsub.f32 %v381, %v685
    %v1022 = vsub.f32 %v382, %v685
    %v1023 = vsub.f32 %v383, %v688
    %v1024 = vsub.f32 %v384, %v688
    %v1025 = vsub.f32 %v385, %v691
    %v1026 = vsub.f32 %v386, %v691
    %v1027 = vsub.f32 %v387, %v694
    %v1028 = vsub.f32 %v388, %v694
    %v1029 = vsub.f32 %v389, %v697
    %v1030 = vsub.f32 %v390, %v697
    %v1031 = vsub.f32 %v391, %v700
    %v1032 = vsub.f32 %v392, %v700
    %v1033 = vsub.f32 %v393, %v703
    %v1034 = vsub.f32 %v394, %v703
    %v1035 = vsub.f32 %v395, %v706
    %v1036 = vsub.f32 %v396, %v706
    %v1037 = vsub.f32 %v397, %v709
    %v1038 = vsub.f32 %v398, %v709
    %v1039 = vsub.f32 %v399, %v712
    %v1040 = vsub.f32 %v400, %v712
    %v1041 = vsub.f32 %v401, %v715
    %v1042 = vsub.f32 %v402, %v715
    %v1043 = vsub.f32 %v403, %v718
    %v1044 = vsub.f32 %v404, %v718
    %v1045 = vsub.f32 %v405, %v721
    %v1046 = vsub.f32 %v406, %v721
    %v1047 = vsub.f32 %v407, %v724
    %v1048 = vsub.f32 %v408, %v724
    %v1049 = vsub.f32 %v409, %v727
    %v1050 = vsub.f32 %v410, %v727
    %v1051 = vsub.f32 %v411, %v730
    %v1052 = vsub.f32 %v412, %v730
    %v1053 = vsub.f32 %v413, %v733
    %v1054 = vsub.f32 %v414, %v733
    %v1055 = vsub.f32 %v415, %v736
    %v1056 = vsub.f32 %v416, %v736
    %v1057 = vsub.f32 %v417, %v739
    %v1058 = vsub.f32 %v418, %v739
    %v1059 = vsub.f32 %v419, %v742
    %v1060 = vsub.f32 %v420, %v742
    %v1061 = vsub.f32 %v421, %v745
    %v1062 = vsub.f32 %v422, %v745
    %v1063 = vsub.f32 %v423, %v748
    %v1064 = vsub.f32 %v424, %v748
    %v1065 = vsub.f32 %v425, %v751
    %v1066 = vsub.f32 %v426, %v751
    %v1067 = vsub.f32 %v427, %v754
    %v1068 = vsub.f32 %v428, %v754
    %v1069 = vsub.f32 %v429, %v757
    %v1070 = vsub.f32 %v430, %v757
    %v1071 = vsub.f32 %v431, %v760
    %v1072 = vsub.f32 %v432, %v760
    %v1073 = vsub.f32 %v433, %v763
    %v1074 = vsub.f32 %v434, %v763
    %v1075 = vsub.f32 %v435, %v766
    %v1076 = vsub.f32 %v436, %v766
    %v1077 = vsub.f32 %v437, %v769
    %v1078 = vsub.f32 %v438, %v769
    %v1079 = vsub.f32 %v439, %v772
    %v1080 = vsub.f32 %v440, %v772
    %v1081 = vsub.f32 %v441, %v775
    %v1082 = vsub.f32 %v442, %v775
    %v1083 = vsub.f32 %v443, %v778
    %v1084 = vsub.f32 %v444, %v778
    %v1085 = vsub.f32 %v445, %v781
    %v1086 = vsub.f32 %v446, %v781
    %v1087 = vsub.f32 %v447, %v784
    %v1088 = vsub.f32 %v448, %v784
    %v1089 = vsub.f32 %v449, %v787
    %v1090 = vsub.f32 %v450, %v787
    %v1091 = vsub.f32 %v451, %v790
    %v1092 = vsub.f32 %v452, %v790
    %v1093 = vsub.f32 %v453, %v793
    %v1094 = vsub.f32 %v454, %v793
    %v1095 = vsub.f32 %v455, %v796
    %v1096 = vsub.f32 %v456, %v796
    %v1097 = vsub.f32 %v457, %v799
    %v1098 = vsub.f32 %v458, %v799
    %v1099 = vsub.f32 %v459, %v802
    %v1100 = vsub.f32 %v460, %v802
    %v1101 = vsub.f32 %v461, %v805
    %v1102 = vsub.f32 %v462, %v805
    %v1103 = vsub.f32 %v463, %v808
    %v1104 = vsub.f32 %v464, %v808
    %v1105 = vsub.f32 %v465, %v811
    %v1106 = vsub.f32 %v466, %v811
    %v1107 = vsub.f32 %v467, %v814
    %v1108 = vsub.f32 %v468, %v814
    %v1109 = vsub.f32 %v469, %v817
    %v1110 = vsub.f32 %v470, %v817
    %v1111 = vsub.f32 %v471, %v820
    %v1112 = vsub.f32 %v472, %v820
    %v1113 = vsub.f32 %v473, %v823
    %v1114 = vsub.f32 %v474, %v823
    %v1115 = vsub.f32 %v475, %v826
    %v1116 = vsub.f32 %v476, %v826
    %v1117 = vsub.f32 %v477, %v829
    %v1118 = vsub.f32 %v478, %v829
    %v1119 = vsub.f32 %v479, %v832
    %v1120 = vsub.f32 %v480, %v832
    %v1121 = vsub.f32 %v481, %v835
    %v1122 = vsub.f32 %v482, %v835
    %v1123 = vsub.f32 %v483, %v838
    %v1124 = vsub.f32 %v484, %v838
    %v1125 = vsub.f32 %v485, %v841
    %v1126 = vsub.f32 %v486, %v841
    %v1127 = vsub.f32 %v487, %v844
    %v1128 = vsub.f32 %v488, %v844
    %v1129 = vsub.f32 %v489, %v847
    %v1130 = vsub.f32 %v490, %v847
    %v1131 = vsub.f32 %v491, %v850
    %v1132 = vsub.f32 %v492, %v850
    %v1133 = vsub.f32 %v493, %v853
    %v1134 = vsub.f32 %v494, %v853
    %v1135 = vsub.f32 %v495, %v856
    %v1136 = vsub.f32 %v496, %v856
    %v1137 = vsub.f32 %v497, %v859
    %v1138 = vsub.f32 %v498, %v859
    %v1139 = vsub.f32 %v499, %v862
    %v1140 = vsub.f32 %v500, %v862
    %v1141 = vsub.f32 %v501, %v865
    %v1142 = vsub.f32 %v502, %v865
    %v1143 = vsub.f32 %v503, %v868
    %v1144 = vsub.f32 %v504, %v868
    %v1145 = vsub.f32 %v505, %v871
    %v1146 = vsub.f32 %v506, %v871
    %v1147 = vsub.f32 %v507, %v874
    %v1148 = vsub.f32 %v508, %v874
    %v1149 = vsub.f32 %v509, %v877
    %v1150 = vsub.f32 %v510, %v877
    %v1151 = vsub.f32 %v511, %v880
    %v1152 = vsub.f32 %v512, %v880
    %v1153 = vsub.f32 %v513, %v883
    %v1154 = vsub.f32 %v514, %v883
    %v1155 = vsub.f32 %v515, %v886
    %v1156 = vsub.f32 %v516, %v886
    %v1157 = vsub.f32 %v517, %v889
    %v1158 = vsub.f32 %v518, %v889
    %v1159 = vsub.f32 %v519, %v892
    %v1160 = vsub.f32 %v520, %v892
    %v1161 = vsub.f32 %v521, %v895
    %v1162 = vsub.f32 %v522, %v895
    %v1163 = vsub.f32 %v523, %v898
    %v1164 = vsub.f32 %v524, %v898
    %v1165 = vsub.f32 %v525, %v901
    %v1166 = vsub.f32 %v526, %v901
    %v1167 = vsub.f32 %v527, %v904
    %v1168 = vsub.f32 %v528, %v904
    %v1169 = vsub.f32 %v529, %v907
    %v1170 = vsub.f32 %v530, %v907
    %v1171 = vsub.f32 %v531, %v910
    %v1172 = vsub.f32 %v532, %v910
    %v1173 = vsub.f32 %v533, %v913
    %v1174 = vsub.f32 %v534, %v913
    %v1175 = vsub.f32 %v535, %v916
    %v1176 = vsub.f32 %v536, %v916
    %v1177 = vsub.f32 %v537, %v919
    %v1178 = vsub.f32 %v538, %v919
    %v1179 = vsub.f32 %v539, %v922
    %v1180 = vsub.f32 %v540, %v922
    %v1181 = vsub.f32 %v541, %v925
    %v1182 = vsub.f32 %v542, %v925
    %v1183 = vsub.f32 %v543, %v928
    %v1184 = vsub.f32 %v544, %v928
    %v1185 = vmul.f32 %v929, 1.442695
    %v1186 = vpow.pop %v1185
    %v1187 = vmul.f32 %v930, 1.442695
    %v1188 = vpow.pop %v1187
    %v1189 = vmul.f32 %v931, 1.442695
    %v1190 = vpow.pop %v1189
    %v1191 = vmul.f32 %v932, 1.442695
    %v1192 = vpow.pop %v1191
    %v1193 = vmul.f32 %v933, 1.442695
    %v1194 = vpow.pop %v1193
    %v1195 = vmul.f32 %v934, 1.442695
    %v1196 = vpow.pop %v1195
    %v1197 = vmul.f32 %v935, 1.442695
    %v1198 = vpow.pop %v1197
    %v1199 = vmul.f32 %v936, 1.442695
    %v1200 = vpow.pop %v1199
    %v1201 = vmul.f32 %v937, 1.442695
    %v1202 = vpow.pop %v1201
    %v1203 = vmul.f32 %v938, 1.442695
    %v1204 = vpow.pop %v1203
    %v1205 = vmul.f32 %v939, 1.442695
    %v1206 = vpow.pop %v1205
    %v1207 = vmul.f32 %v940, 1.442695
    %v1208 = vpow.pop %v1207
    %v1209 = vmul.f32 %v941, 1.442695
    %v1210 = vpow.pop %v1209
    %v1211 = vmul.f32 %v942, 1.442695
    %v1212 = vpow.pop %v1211
    %v1213 = vmul.f32 %v943, 1.442695
    %v1214 = vpow.pop %v1213
    %v1215 = vmul.f32 %v944, 1.442695
    %v1216 = vpow.pop %v1215
    %v1217 = vmul.f32 %v945, 1.442695
    %v1218 = vpow.pop %v1217
    %v1219 = vmul.f32 %v946, 1.442695
    %v1220 = vpow.pop %v1219
    %v1221 = vmul.f32 %v947, 1.442695
    %v1222 = vpow.pop %v1221
    %v1223 = vmul.f32 %v948, 1.442695
    %v1224 = vpow.pop %v1223
    %v1225 = vmul.f32 %v949, 1.442695
    %v1226 = vpow.pop %v1225
    %v1227 = vmul.f32 %v950, 1.442695
    %v1228 = vpow.pop %v1227
    %v1229 = vmul.f32 %v951, 1.442695
    %v1230 = vpow.pop %v1229
    %v1231 = vmul.f32 %v952, 1.442695
    %v1232 = vpow.pop %v1231
    %v1233 = vmul.f32 %v953, 1.442695
    %v1234 = vpow.pop %v1233
    %v1235 = vmul.f32 %v954, 1.442695
    %v1236 = vpow.pop %v1235
    %v1237 = vmul.f32 %v955, 1.442695
    %v1238 = vpow.pop %v1237
    %v1239 = vmul.f32 %v956, 1.442695
    %v1240 = vpow.pop %v1239
    %v1241 = vmul.f32 %v957, 1.442695
    %v1242 = vpow.pop %v1241
    %v1243 = vmul.f32 %v958, 1.442695
    %v1244 = vpow.pop %v1243
    %v1245 = vmul.f32 %v959, 1.442695
    %v1246 = vpow.pop %v1245
    %v1247 = vmul.f32 %v960, 1.442695
    %v1248 = vpow.pop %v1247
    %v1249 = vmul.f32 %v961, 1.442695
    %v1250 = vpow.pop %v1249
    %v1251 = vmul.f32 %v962, 1.442695
    %v1252 = vpow.pop %v1251
    %v1253 = vmul.f32 %v963, 1.442695
    %v1254 = vpow.pop %v1253
    %v1255 = vmul.f32 %v964, 1.442695
    %v1256 = vpow.pop %v1255
    %v1257 = vmul.f32 %v965, 1.442695
    %v1258 = vpow.pop %v1257
    %v1259 = vmul.f32 %v966, 1.442695
    %v1260 = vpow.pop %v1259
    %v1261 = vmul.f32 %v967, 1.442695
    %v1262 = vpow.pop %v1261
    %v1263 = vmul.f32 %v968, 1.442695
    %v1264 = vpow.pop %v1263
    %v1265 = vmul.f32 %v969, 1.442695
    %v1266 = vpow.pop %v1265
    %v1267 = vmul.f32 %v970, 1.442695
    %v1268 = vpow.pop %v1267
    %v1269 = vmul.f32 %v971, 1.442695
    %v1270 = vpow.pop %v1269
    %v1271 = vmul.f32 %v972, 1.442695
    %v1272 = vpow.pop %v1271
    %v1273 = vmul.f32 %v973, 1.442695
    %v1274 = vpow.pop %v1273
    %v1275 = vmul.f32 %v974, 1.442695
    %v1276 = vpow.pop %v1275
    %v1277 = vmul.f32 %v975, 1.442695
    %v1278 = vpow.pop %v1277
    %v1279 = vmul.f32 %v976, 1.442695
    %v1280 = vpow.pop %v1279
    %v1281 = vmul.f32 %v977, 1.442695
    %v1282 = vpow.pop %v1281
    %v1283 = vmul.f32 %v978, 1.442695
    %v1284 = vpow.pop %v1283
    %v1285 = vmul.f32 %v979, 1.442695
    %v1286 = vpow.pop %v1285
    %v1287 = vmul.f32 %v980, 1.442695
    %v1288 = vpow.pop %v1287
    %v1289 = vmul.f32 %v981, 1.442695
    %v1290 = vpow.pop %v1289
    %v1291 = vmul.f32 %v982, 1.442695
    %v1292 = vpow.pop %v1291
    %v1293 = vmul.f32 %v983, 1.442695
    %v1294 = vpow.pop %v1293
    %v1295 = vmul.f32 %v984, 1.442695
    %v1296 = vpow.pop %v1295
    %v1297 = vmul.f32 %v985, 1.442695
    %v1298 = vpow.pop %v1297
    %v1299 = vmul.f32 %v986, 1.442695
    %v1300 = vpow.pop %v1299
    %v1301 = vmul.f32 %v987, 1.442695
    %v1302 = vpow.pop %v1301
    %v1303 = vmul.f32 %v988, 1.442695
    %v1304 = vpow.pop %v1303
    %v1305 = vmul.f32 %v989, 1.442695
    %v1306 = vpow.pop %v1305
    %v1307 = vmul.f32 %v990, 1.442695
    %v1308 = vpow.pop %v1307
    %v1309 = vmul.f32 %v991, 1.442695
    %v1310 = vpow.pop %v1309
    %v1311 = vmul.f32 %v992, 1.442695
    %v1312 = vpow.pop %v1311
    %v1313 = vmul.f32 %v993, 1.442695
    %v1314 = vpow.pop %v1313
    %v1315 = vmul.f32 %v994, 1.442695
    %v1316 = vpow.pop %v1315
    %v1317 = vmul.f32 %v995, 1.442695
    %v1318 = vpow.pop %v1317
    %v1319 = vmul.f32 %v996, 1.442695
    %v1320 = vpow.pop %v1319
    %v1321 = vmul.f32 %v997, 1.442695
    %v1322 = vpow.pop %v1321
    %v1323 = vmul.f32 %v998, 1.442695
    %v1324 = vpow.pop %v1323
    %v1325 = vmul.f32 %v999, 1.442695
    %v1326 = vpow.pop %v1325
    %v1327 = vmul.f32 %v1000, 1.442695
    %v1328 = vpow.pop %v1327
    %v1329 = vmul.f32 %v1001, 1.442695
    %v1330 = vpow.pop %v1329
    %v1331 = vmul.f32 %v1002, 1.442695
    %v1332 = vpow.pop %v1331
    %v1333 = vmul.f32 %v1003, 1.442695
    %v1334 = vpow.pop %v1333
    %v1335 = vmul.f32 %v1004, 1.442695
    %v1336 = vpow.pop %v1335
    %v1337 = vmul.f32 %v1005, 1.442695
    %v1338 = vpow.pop %v1337
    %v1339 = vmul.f32 %v1006, 1.442695
    %v1340 = vpow.pop %v1339
    %v1341 = vmul.f32 %v1007, 1.442695
    %v1342 = vpow.pop %v1341
    %v1343 = vmul.f32 %v1008, 1.442695
    %v1344 = vpow.pop %v1343
    %v1345 = vmul.f32 %v1009, 1.442695
    %v1346 = vpow.pop %v1345
    %v1347 = vmul.f32 %v1010, 1.442695
    %v1348 = vpow.pop %v1347
    %v1349 = vmul.f32 %v1011, 1.442695
    %v1350 = vpow.pop %v1349
    %v1351 = vmul.f32 %v1012, 1.442695
    %v1352 = vpow.pop %v1351
    %v1353 = vmul.f32 %v1013, 1.442695
    %v1354 = vpow.pop %v1353
    %v1355 = vmul.f32 %v1014, 1.442695
    %v1356 = vpow.pop %v1355
    %v1357 = vmul.f32 %v1015, 1.442695
    %v1358 = vpow.pop %v1357
    %v1359 = vmul.f32 %v1016, 1.442695
    %v1360 = vpow.pop %v1359
    %v1361 = vmul.f32 %v1017, 1.442695
    %v1362 = vpow.pop %v1361
    %v1363 = vmul.f32 %v1018, 1.442695
    %v1364 = vpow.pop %v1363
    %v1365 = vmul.f32 %v1019, 1.442695
    %v1366 = vpow.pop %v1365
    %v1367 = vmul.f32 %v1020, 1.442695
    %v1368 = vpow.pop %v1367
    %v1369 = vmul.f32 %v1021, 1.442695
    %v1370 = vpow.pop %v1369
    %v1371 = vmul.f32 %v1022, 1.442695
    %v1372 = vpow.pop %v1371
    %v1373 = vmul.f32 %v1023, 1.442695
    %v1374 = vpow.pop %v1373
    %v1375 = vmul.f32 %v1024, 1.442695
    %v1376 = vpow.pop %v1375
    %v1377 = vmul.f32 %v1025, 1.442695
    %v1378 = vpow.pop %v1377
    %v1379 = vmul.f32 %v1026, 1.442695
    %v1380 = vpow.pop %v1379
    %v1381 = vmul.f32 %v1027, 1.442695
    %v1382 = vpow.pop %v1381
    %v1383 = vmul.f32 %v1028, 1.442695
    %v1384 = vpow.pop %v1383
    %v1385 = vmul.f32 %v1029, 1.442695
    %v1386 = vpow.pop %v1385
    %v1387 = vmul.f32 %v1030, 1.442695
    %v1388 = vpow.pop %v1387
    %v1389 = vmul.f32 %v1031, 1.442695
    %v1390 = vpow.pop %v1389
    %v1391 = vmul.f32 %v1032, 1.442695
    %v1392 = vpow.pop %v1391
    %v1393 = vmul.f32 %v1033, 1.442695
    %v1394 = vpow.pop %v1393
    %v1395 = vmul.f32 %v1034, 1.442695
    %v1396 = vpow.pop %v1395
    %v1397 = vmul.f32 %v1035, 1.442695
    %v1398 = vpow.pop %v1397
    %v1399 = vmul.f32 %v1036, 1.442695
    %v1400 = vpow.pop %v1399
    %v1401 = vmul.f32 %v1037, 1.442695
    %v1402 = vpow.pop %v1401
    %v1403 = vmul.f32 %v1038, 1.442695
    %v1404 = vpow.pop %v1403
    %v1405 = vmul.f32 %v1039, 1.442695
    %v1406 = vpow.pop %v1405
    %v1407 = vmul.f32 %v1040, 1.442695
    %v1408 = vpow.pop %v1407
    %v1409 = vmul.f32 %v1041, 1.442695
    %v1410 = vpow.pop %v1409
    %v1411 = vmul.f32 %v1042, 1.442695
    %v1412 = vpow.pop %v1411
    %v1413 = vmul.f32 %v1043, 1.442695
    %v1414 = vpow.pop %v1413
    %v1415 = vmul.f32 %v1044, 1.442695
    %v1416 = vpow.pop %v1415
    %v1417 = vmul.f32 %v1045, 1.442695
    %v1418 = vpow.pop %v1417
    %v1419 = vmul.f32 %v1046, 1.442695
    %v1420 = vpow.pop %v1419
    %v1421 = vmul.f32 %v1047, 1.442695
    %v1422 = vpow.pop %v1421
    %v1423 = vmul.f32 %v1048, 1.442695
    %v1424 = vpow.pop %v1423
    %v1425 = vmul.f32 %v1049, 1.442695
    %v1426 = vpow.pop %v1425
    %v1427 = vmul.f32 %v1050, 1.442695
    %v1428 = vpow.pop %v1427
    %v1429 = vmul.f32 %v1051, 1.442695
    %v1430 = vpow.pop %v1429
    %v1431 = vmul.f32 %v1052, 1.442695
    %v1432 = vpow.pop %v1431
    %v1433 = vmul.f32 %v1053, 1.442695
    %v1434 = vpow.pop %v1433
    %v1435 = vmul.f32 %v1054, 1.442695
    %v1436 = vpow.pop %v1435
    %v1437 = vmul.f32 %v1055, 1.442695
    %v1438 = vpow.pop %v1437
    %v1439 = vmul.f32 %v1056, 1.442695
    %v1440 = vpow.pop %v1439
    %v1441 = vmul.f32 %v1057, 1.442695
    %v1442 = vpow.pop %v1441
    %v1443 = vmul.f32 %v1058, 1.442695
    %v1444 = vpow.pop %v1443
    %v1445 = vmul.f32 %v1059, 1.442695
    %v1446 = vpow.pop %v1445
    %v1447 = vmul.f32 %v1060, 1.442695
    %v1448 = vpow.pop %v1447
    %v1449 = vmul.f32 %v1061, 1.442695
    %v1450 = vpow.pop %v1449
    %v1451 = vmul.f32 %v1062, 1.442695
    %v1452 = vpow.pop %v1451
    %v1453 = vmul.f32 %v1063, 1.442695
    %v1454 = vpow.pop %v1453
    %v1455 = vmul.f32 %v1064, 1.442695
    %v1456 = vpow.pop %v1455
    %v1457 = vmul.f32 %v1065, 1.442695
    %v1458 = vpow.pop %v1457
    %v1459 = vmul.f32 %v1066, 1.442695
    %v1460 = vpow.pop %v1459
    %v1461 = vmul.f32 %v1067, 1.442695
    %v1462 = vpow.pop %v1461
    %v1463 = vmul.f32 %v1068, 1.442695
    %v1464 = vpow.pop %v1463
    %v1465 = vmul.f32 %v1069, 1.442695
    %v1466 = vpow.pop %v1465
    %v1467 = vmul.f32 %v1070, 1.442695
    %v1468 = vpow.pop %v1467
    %v1469 = vmul.f32 %v1071, 1.442695
    %v1470 = vpow.pop %v1469
    %v1471 = vmul.f32 %v1072, 1.442695
    %v1472 = vpow.pop %v1471
    %v1473 = vmul.f32 %v1073, 1.442695
    %v1474 = vpow.pop %v1473
    %v1475 = vmul.f32 %v1074, 1.442695
    %v1476 = vpow.pop %v1475
    %v1477 = vmul.f32 %v1075, 1.442695
    %v1478 = vpow.pop %v1477
    %v1479 = vmul.f32 %v1076, 1.442695
    %v1480 = vpow.pop %v1479
    %v1481 = vmul.f32 %v1077, 1.442695
    %v1482 = vpow.pop %v1481
    %v1483 = vmul.f32 %v1078, 1.442695
    %v1484 = vpow.pop %v1483
    %v1485 = vmul.f32 %v1079, 1.442695
    %v1486 = vpow.pop %v1485
    %v1487 = vmul.f32 %v1080, 1.442695
    %v1488 = vpow.pop %v1487
    %v1489 = vmul.f32 %v1081, 1.442695
    %v1490 = vpow.pop %v1489
    %v1491 = vmul.f32 %v1082, 1.442695
    %v1492 = vpow.pop %v1491
    %v1493 = vmul.f32 %v1083, 1.442695
    %v1494 = vpow.pop %v1493
    %v1495 = vmul.f32 %v1084, 1.442695
    %v1496 = vpow.pop %v1495
    %v1497 = vmul.f32 %v1085, 1.442695
    %v1498 = vpow.pop %v1497
    %v1499 = vmul.f32 %v1086, 1.442695
    %v1500 = vpow.pop %v1499
    %v1501 = vmul.f32 %v1087, 1.442695
    %v1502 = vpow.pop %v1501
    %v1503 = vmul.f32 %v1088, 1.442695
    %v1504 = vpow.pop %v1503
    %v1505 = vmul.f32 %v1089, 1.442695
    %v1506 = vpow.pop %v1505
    %v1507 = vmul.f32 %v1090, 1.442695
    %v1508 = vpow.pop %v1507
    %v1509 = vmul.f32 %v1091, 1.442695
    %v1510 = vpow.pop %v1509
    %v1511 = vmul.f32 %v1092, 1.442695
    %v1512 = vpow.pop %v1511
    %v1513 = vmul.f32 %v1093, 1.442695
    %v1514 = vpow.pop %v1513
    %v1515 = vmul.f32 %v1094, 1.442695
    %v1516 = vpow.pop %v1515
    %v1517 = vmul.f32 %v1095, 1.442695
    %v1518 = vpow.pop %v1517
    %v1519 = vmul.f32 %v1096, 1.442695
    %v1520 = vpow.pop %v1519
    %v1521 = vmul.f32 %v1097, 1.442695
    %v1522 = vpow.pop %v1521
    %v1523 = vmul.f32 %v1098, 1.442695
    %v1524 = vpow.pop %v1523
    %v1525 = vmul.f32 %v1099, 1.442695
    %v1526 = vpow.pop %v1525
    %v1527 = vmul.f32 %v1100, 1.442695
    %v1528 = vpow.pop %v1527
    %v1529 = vmul.f32 %v1101, 1.442695
    %v1530 = vpow.pop %v1529
    %v1531 = vmul.f32 %v1102, 1.442695
    %v1532 = vpow.pop %v1531
    %v1533 = vmul.f32 %v1103, 1.442695
    %v1534 = vpow.pop %v1533
    %v1535 = vmul.f32 %v1104, 1.442695
    %v1536 = vpow.pop %v1535
    %v1537 = vmul.f32 %v1105, 1.442695
    %v1538 = vpow.pop %v1537
    %v1539 = vmul.f32 %v1106, 1.442695
    %v1540 = vpow.pop %v1539
    %v1541 = vmul.f32 %v1107, 1.442695
    %v1542 = vpow.pop %v1541
    %v1543 = vmul.f32 %v1108, 1.442695
    %v1544 = vpow.pop %v1543
    %v1545 = vmul.f32 %v1109, 1.442695
    %v1546 = vpow.pop %v1545
    %v1547 = vmul.f32 %v1110, 1.442695
    %v1548 = vpow.pop %v1547
    %v1549 = vmul.f32 %v1111, 1.442695
    %v1550 = vpow.pop %v1549
    %v1551 = vmul.f32 %v1112, 1.442695
    %v1552 = vpow.pop %v1551
    %v1553 = vmul.f32 %v1113, 1.442695
    %v1554 = vpow.pop %v1553
    %v1555 = vmul.f32 %v1114, 1.442695
    %v1556 = vpow.pop %v1555
    %v1557 = vmul.f32 %v1115, 1.442695
    %v1558 = vpow.pop %v1557
    %v1559 = vmul.f32 %v1116, 1.442695
    %v1560 = vpow.pop %v1559
    %v1561 = vmul.f32 %v1117, 1.442695
    %v1562 = vpow.pop %v1561
    %v1563 = vmul.f32 %v1118, 1.442695
    %v1564 = vpow.pop %v1563
    %v1565 = vmul.f32 %v1119, 1.442695
    %v1566 = vpow.pop %v1565
    %v1567 = vmul.f32 %v1120, 1.442695
    %v1568 = vpow.pop %v1567
    %v1569 = vmul.f32 %v1121, 1.442695
    %v1570 = vpow.pop %v1569
    %v1571 = vmul.f32 %v1122, 1.442695
    %v1572 = vpow.pop %v1571
    %v1573 = vmul.f32 %v1123, 1.442695
    %v1574 = vpow.pop %v1573
    %v1575 = vmul.f32 %v1124, 1.442695
    %v1576 = vpow.pop %v1575
    %v1577 = vmul.f32 %v1125, 1.442695
    %v1578 = vpow.pop %v1577
    %v1579 = vmul.f32 %v1126, 1.442695
    %v1580 = vpow.pop %v1579
    %v1581 = vmul.f32 %v1127, 1.442695
    %v1582 = vpow.pop %v1581
    %v1583 = vmul.f32 %v1128, 1.442695
    %v1584 = vpow.pop %v1583
    %v1585 = vmul.f32 %v1129, 1.442695
    %v1586 = vpow.pop %v1585
    %v1587 = vmul.f32 %v1130, 1.442695
    %v1588 = vpow.pop %v1587
    %v1589 = vmul.f32 %v1131, 1.442695
    %v1590 = vpow.pop %v1589
    %v1591 = vmul.f32 %v1132, 1.442695
    %v1592 = vpow.pop %v1591
    %v1593 = vmul.f32 %v1133, 1.442695
    %v1594 = vpow.pop %v1593
    %v1595 = vmul.f32 %v1134, 1.442695
    %v1596 = vpow.pop %v1595
    %v1597 = vmul.f32 %v1135, 1.442695
    %v1598 = vpow.pop %v1597
    %v1599 = vmul.f32 %v1136, 1.442695
    %v1600 = vpow.pop %v1599
    %v1601 = vmul.f32 %v1137, 1.442695
    %v1602 = vpow.pop %v1601
    %v1603 = vmul.f32 %v1138, 1.442695
    %v1604 = vpow.pop %v1603
    %v1605 = vmul.f32 %v1139, 1.442695
    %v1606 = vpow.pop %v1605
    %v1607 = vmul.f32 %v1140, 1.442695
    %v1608 = vpow.pop %v1607
    %v1609 = vmul.f32 %v1141, 1.442695
    %v1610 = vpow.pop %v1609
    %v1611 = vmul.f32 %v1142, 1.442695
    %v1612 = vpow.pop %v1611
    %v1613 = vmul.f32 %v1143, 1.442695
    %v1614 = vpow.pop %v1613
    %v1615 = vmul.f32 %v1144, 1.442695
    %v1616 = vpow.pop %v1615
    %v1617 = vmul.f32 %v1145, 1.442695
    %v1618 = vpow.pop %v1617
    %v1619 = vmul.f32 %v1146, 1.442695
    %v1620 = vpow.pop %v1619
    %v1621 = vmul.f32 %v1147, 1.442695
    %v1622 = vpow.pop %v1621
    %v1623 = vmul.f32 %v1148, 1.442695
    %v1624 = vpow.pop %v1623
    %v1625 = vmul.f32 %v1149, 1.442695
    %v1626 = vpow.pop %v1625
    %v1627 = vmul.f32 %v1150, 1.442695
    %v1628 = vpow.pop %v1627
    %v1629 = vmul.f32 %v1151, 1.442695
    %v1630 = vpow.pop %v1629
    %v1631 = vmul.f32 %v1152, 1.442695
    %v1632 = vpow.pop %v1631
    %v1633 = vmul.f32 %v1153, 1.442695
    %v1634 = vpow.pop %v1633
    %v1635 = vmul.f32 %v1154, 1.442695
    %v1636 = vpow.pop %v1635
    %v1637 = vmul.f32 %v1155, 1.442695
    %v1638 = vpow.pop %v1637
    %v1639 = vmul.f32 %v1156, 1.442695
    %v1640 = vpow.pop %v1639
    %v1641 = vmul.f32 %v1157, 1.442695
    %v1642 = vpow.pop %v1641
    %v1643 = vmul.f32 %v1158, 1.442695
    %v1644 = vpow.pop %v1643
    %v1645 = vmul.f32 %v1159, 1.442695
    %v1646 = vpow.pop %v1645
    %v1647 = vmul.f32 %v1160, 1.442695
    %v1648 = vpow.pop %v1647
    %v1649 = vmul.f32 %v1161, 1.442695
    %v1650 = vpow.pop %v1649
    %v1651 = vmul.f32 %v1162, 1.442695
    %v1652 = vpow.pop %v1651
    %v1653 = vmul.f32 %v1163, 1.442695
    %v1654 = vpow.pop %v1653
    %v1655 = vmul.f32 %v1164, 1.442695
    %v1656 = vpow.pop %v1655
    %v1657 = vmul.f32 %v1165, 1.442695
    %v1658 = vpow.pop %v1657
    %v1659 = vmul.f32 %v1166, 1.442695
    %v1660 = vpow.pop %v1659
    %v1661 = vmul.f32 %v1167, 1.442695
    %v1662 = vpow.pop %v1661
    %v1663 = vmul.f32 %v1168, 1.442695
    %v1664 = vpow.pop %v1663
    %v1665 = vmul.f32 %v1169, 1.442695
    %v1666 = vpow.pop %v1665
    %v1667 = vmul.f32 %v1170, 1.442695
    %v1668 = vpow.pop %v1667
    %v1669 = vmul.f32 %v1171, 1.442695
    %v1670 = vpow.pop %v1669
    %v1671 = vmul.f32 %v1172, 1.442695
    %v1672 = vpow.pop %v1671
    %v1673 = vmul.f32 %v1173, 1.442695
    %v1674 = vpow.pop %v1673
    %v1675 = vmul.f32 %v1174, 1.442695
    %v1676 = vpow.pop %v1675
    %v1677 = vmul.f32 %v1175, 1.442695
    %v1678 = vpow.pop %v1677
    %v1679 = vmul.f32 %v1176, 1.442695
    %v1680 = vpow.pop %v1679
    %v1681 = vmul.f32 %v1177, 1.442695
    %v1682 = vpow.pop %v1681
    %v1683 = vmul.f32 %v1178, 1.442695
    %v1684 = vpow.pop %v1683
    %v1685 = vmul.f32 %v1179, 1.442695
    %v1686 = vpow.pop %v1685
    %v1687 = vmul.f32 %v1180, 1.442695
    %v1688 = vpow.pop %v1687
    %v1689 = vmul.f32 %v1181, 1.442695
    %v1690 = vpow.pop %v1689
    %v1691 = vmul.f32 %v1182, 1.442695
    %v1692 = vpow.pop %v1691
    %v1693 = vmul.f32 %v1183, 1.442695
    %v1694 = vpow.pop %v1693
    %v1695 = vmul.f32 %v1184, 1.442695
    %v1696 = vpow.pop %v1695
    %v1697 = vadd.f32 %v1186, %v1188
    %1698 = vadd.xlane.f32.xlu0 %v1697
    %v1699 = vpop.xlane.xlu0 %1698
    %v1700 = vadd.f32 %v1190, %v1192
    %1701 = vadd.xlane.f32.xlu0 %v1700
    %v1702 = vpop.xlane.xlu0 %1701
    %v1703 = vadd.f32 %v1194, %v1196
    %1704 = vadd.xlane.f32.xlu0 %v1703
    %v1705 = vpop.xlane.xlu0 %1704
    %v1706 = vadd.f32 %v1198, %v1200
    %1707 = vadd.xlane.f32.xlu0 %v1706
    %v1708 = vpop.xlane.xlu0 %1707
    %v1709 = vadd.f32 %v1202, %v1204
    %1710 = vadd.xlane.f32.xlu0 %v1709
    %v1711 = vpop.xlane.xlu0 %1710
    %v1712 = vadd.f32 %v1206, %v1208
    %1713 = vadd.xlane.f32.xlu0 %v1712
    %v1714 = vpop.xlane.xlu0 %1713
    %v1715 = vadd.f32 %v1210, %v1212
    %1716 = vadd.xlane.f32.xlu0 %v1715
    %v1717 = vpop.xlane.xlu0 %1716
    %v1718 = vadd.f32 %v1214, %v1216
    %1719 = vadd.xlane.f32.xlu0 %v1718
    %v1720 = vpop.xlane.xlu0 %1719
    %v1721 = vadd.f32 %v1218, %v1220
    %1722 = vadd.xlane.f32.xlu0 %v1721
    %v1723 = vpop.xlane.xlu0 %1722
    %v1724 = vadd.f32 %v1222, %v1224
    %1725 = vadd.xlane.f32.xlu0 %v1724
    %v1726 = vpop.xlane.xlu0 %1725
    %v1727 = vadd.f32 %v1226, %v1228
    %1728 = vadd.xlane.f32.xlu0 %v1727
    %v1729 = vpop.xlane.xlu0 %1728
    %v1730 = vadd.f32 %v1230, %v1232
    %1731 = vadd.xlane.f32.xlu0 %v1730
    %v1732 = vpop.xlane.xlu0 %1731
    %v1733 = vadd.f32 %v1234, %v1236
    %1734 = vadd.xlane.f32.xlu0 %v1733
    %v1735 = vpop.xlane.xlu0 %1734
    %v1736 = vadd.f32 %v1238, %v1240
    %1737 = vadd.xlane.f32.xlu0 %v1736
    %v1738 = vpop.xlane.xlu0 %1737
    %v1739 = vadd.f32 %v1242, %v1244
    %1740 = vadd.xlane.f32.xlu0 %v1739
    %v1741 = vpop.xlane.xlu0 %1740
    %v1742 = vadd.f32 %v1246, %v1248
    %1743 = vadd.xlane.f32.xlu0 %v1742
    %v1744 = vpop.xlane.xlu0 %1743
    %v1745 = vadd.f32 %v1250, %v1252
    %1746 = vadd.xlane.f32.xlu0 %v1745
    %v1747 = vpop.xlane.xlu0 %1746
    %v1748 = vadd.f32 %v1254, %v1256
    %1749 = vadd.xlane.f32.xlu0 %v1748
    %v1750 = vpop.xlane.xlu0 %1749
    %v1751 = vadd.f32 %v1258, %v1260
    %1752 = vadd.xlane.f32.xlu0 %v1751
    %v1753 = vpop.xlane.xlu0 %1752
    %v1754 = vadd.f32 %v1262, %v1264
    %1755 = vadd.xlane.f32.xlu0 %v1754
    %v1756 = vpop.xlane.xlu0 %1755
    %v1757 = vadd.f32 %v1266, %v1268
    %1758 = vadd.xlane.f32.xlu0 %v1757
    %v1759 = vpop.xlane.xlu0 %1758
    %v1760 = vadd.f32 %v1270, %v1272
    %1761 = vadd.xlane.f32.xlu0 %v1760
    %v1762 = vpop.xlane.xlu0 %1761
    %v1763 = vadd.f32 %v1274, %v1276
    %1764 = vadd.xlane.f32.xlu0 %v1763
    %v1765 = vpop.xlane.xlu0 %1764
    %v1766 = vadd.f32 %v1278, %v1280
    %1767 = vadd.xlane.f32.xlu0 %v1766
    %v1768 = vpop.xlane.xlu0 %1767
    %v1769 = vadd.f32 %v1282, %v1284
    %1770 = vadd.xlane.f32.xlu0 %v1769
    %v1771 = vpop.xlane.xlu0 %1770
    %v1772 = vadd.f32 %v1286, %v1288
    %1773 = vadd.xlane.f32.xlu0 %v1772
    %v1774 = vpop.xlane.xlu0 %1773
    %v1775 = vadd.f32 %v1290, %v1292
    %1776 = vadd.xlane.f32.xlu0 %v1775
    %v1777 = vpop.xlane.xlu0 %1776
    %v1778 = vadd.f32 %v1294, %v1296
    %1779 = vadd.xlane.f32.xlu0 %v1778
    %v1780 = vpop.xlane.xlu0 %1779
    %v1781 = vadd.f32 %v1298, %v1300
    %1782 = vadd.xlane.f32.xlu0 %v1781
    %v1783 = vpop.xlane.xlu0 %1782
    %v1784 = vadd.f32 %v1302, %v1304
    %1785 = vadd.xlane.f32.xlu0 %v1784
    %v1786 = vpop.xlane.xlu0 %1785
    %v1787 = vadd.f32 %v1306, %v1308
    %1788 = vadd.xlane.f32.xlu0 %v1787
    %v1789 = vpop.xlane.xlu0 %1788
    %v1790 = vadd.f32 %v1310, %v1312
    %1791 = vadd.xlane.f32.xlu0 %v1790
    %v1792 = vpop.xlane.xlu0 %1791
    %v1793 = vadd.f32 %v1314, %v1316
    %1794 = vadd.xlane.f32.xlu0 %v1793
    %v1795 = vpop.xlane.xlu0 %1794
    %v1796 = vadd.f32 %v1318, %v1320
    %1797 = vadd.xlane.f32.xlu0 %v1796
    %v1798 = vpop.xlane.xlu0 %1797
    %v1799 = vadd.f32 %v1322, %v1324
    %1800 = vadd.xlane.f32.xlu0 %v1799
    %v1801 = vpop.xlane.xlu0 %1800
    %v1802 = vadd.f32 %v1326, %v1328
    %1803 = vadd.xlane.f32.xlu0 %v1802
    %v1804 = vpop.xlane.xlu0 %1803
    %v1805 = vadd.f32 %v1330, %v1332
    %1806 = vadd.xlane.f32.xlu0 %v1805
    %v1807 = vpop.xlane.xlu0 %1806
    %v1808 = vadd.f32 %v1334, %v1336
    %1809 = vadd.xlane.f32.xlu0 %v1808
    %v1810 = vpop.xlane.xlu0 %1809
    %v1811 = vadd.f32 %v1338, %v1340
    %1812 = vadd.xlane.f32.xlu0 %v1811
    %v1813 = vpop.xlane.xlu0 %1812
    %v1814 = vadd.f32 %v1342, %v1344
    %1815 = vadd.xlane.f32.xlu0 %v1814
    %v1816 = vpop.xlane.xlu0 %1815
    %v1817 = vadd.f32 %v1346, %v1348
    %1818 = vadd.xlane.f32.xlu0 %v1817
    %v1819 = vpop.xlane.xlu0 %1818
    %v1820 = vadd.f32 %v1350, %v1352
    %1821 = vadd.xlane.f32.xlu0 %v1820
    %v1822 = vpop.xlane.xlu0 %1821
    %v1823 = vadd.f32 %v1354, %v1356
    %1824 = vadd.xlane.f32.xlu0 %v1823
    %v1825 = vpop.xlane.xlu0 %1824
    %v1826 = vadd.f32 %v1358, %v1360
    %1827 = vadd.xlane.f32.xlu0 %v1826
    %v1828 = vpop.xlane.xlu0 %1827
    %v1829 = vadd.f32 %v1362, %v1364
    %1830 = vadd.xlane.f32.xlu0 %v1829
    %v1831 = vpop.xlane.xlu0 %1830
    %v1832 = vadd.f32 %v1366, %v1368
    %1833 = vadd.xlane.f32.xlu0 %v1832
    %v1834 = vpop.xlane.xlu0 %1833
    %v1835 = vadd.f32 %v1370, %v1372
    %1836 = vadd.xlane.f32.xlu0 %v1835
    %v1837 = vpop.xlane.xlu0 %1836
    %v1838 = vadd.f32 %v1374, %v1376
    %1839 = vadd.xlane.f32.xlu0 %v1838
    %v1840 = vpop.xlane.xlu0 %1839
    %v1841 = vadd.f32 %v1378, %v1380
    %1842 = vadd.xlane.f32.xlu0 %v1841
    %v1843 = vpop.xlane.xlu0 %1842
    %v1844 = vadd.f32 %v1382, %v1384
    %1845 = vadd.xlane.f32.xlu0 %v1844
    %v1846 = vpop.xlane.xlu0 %1845
    %v1847 = vadd.f32 %v1386, %v1388
    %1848 = vadd.xlane.f32.xlu0 %v1847
    %v1849 = vpop.xlane.xlu0 %1848
    %v1850 = vadd.f32 %v1390, %v1392
    %1851 = vadd.xlane.f32.xlu0 %v1850
    %v1852 = vpop.xlane.xlu0 %1851
    %v1853 = vadd.f32 %v1394, %v1396
    %1854 = vadd.xlane.f32.xlu0 %v1853
    %v1855 = vpop.xlane.xlu0 %1854
    %v1856 = vadd.f32 %v1398, %v1400
    %1857 = vadd.xlane.f32.xlu0 %v1856
    %v1858 = vpop.xlane.xlu0 %1857
    %v1859 = vadd.f32 %v1402, %v1404
    %1860 = vadd.xlane.f32.xlu0 %v1859
    %v1861 = vpop.xlane.xlu0 %1860
    %v1862 = vadd.f32 %v1406, %v1408
    %1863 = vadd.xlane.f32.xlu0 %v1862
    %v1864 = vpop.xlane.xlu0 %1863
    %v1865 = vadd.f32 %v1410, %v1412
    %1866 = vadd.xlane.f32.xlu0 %v1865
    %v1867 = vpop.xlane.xlu0 %1866
    %v1868 = vadd.f32 %v1414, %v1416
    %1869 = vadd.xlane.f32.xlu0 %v1868
    %v1870 = vpop.xlane.xlu0 %1869
    %v1871 = vadd.f32 %v1418, %v1420
    %1872 = vadd.xlane.f32.xlu0 %v1871
    %v1873 = vpop.xlane.xlu0 %1872
    %v1874 = vadd.f32 %v1422, %v1424
    %1875 = vadd.xlane.f32.xlu0 %v1874
    %v1876 = vpop.xlane.xlu0 %1875
    %v1877 = vadd.f32 %v1426, %v1428
    %1878 = vadd.xlane.f32.xlu0 %v1877
    %v1879 = vpop.xlane.xlu0 %1878
    %v1880 = vadd.f32 %v1430, %v1432
    %1881 = vadd.xlane.f32.xlu0 %v1880
    %v1882 = vpop.xlane.xlu0 %1881
    %v1883 = vadd.f32 %v1434, %v1436
    %1884 = vadd.xlane.f32.xlu0 %v1883
    %v1885 = vpop.xlane.xlu0 %1884
    %v1886 = vadd.f32 %v1438, %v1440
    %1887 = vadd.xlane.f32.xlu0 %v1886
    %v1888 = vpop.xlane.xlu0 %1887
    %v1889 = vadd.f32 %v1442, %v1444
    %1890 = vadd.xlane.f32.xlu0 %v1889
    %v1891 = vpop.xlane.xlu0 %1890
    %v1892 = vadd.f32 %v1446, %v1448
    %1893 = vadd.xlane.f32.xlu0 %v1892
    %v1894 = vpop.xlane.xlu0 %1893
    %v1895 = vadd.f32 %v1450, %v1452
    %1896 = vadd.xlane.f32.xlu0 %v1895
    %v1897 = vpop.xlane.xlu0 %1896
    %v1898 = vadd.f32 %v1454, %v1456
    %1899 = vadd.xlane.f32.xlu0 %v1898
    %v1900 = vpop.xlane.xlu0 %1899
    %v1901 = vadd.f32 %v1458, %v1460
    %1902 = vadd.xlane.f32.xlu0 %v1901
    %v1903 = vpop.xlane.xlu0 %1902
    %v1904 = vadd.f32 %v1462, %v1464
    %1905 = vadd.xlane.f32.xlu0 %v1904
    %v1906 = vpop.xlane.xlu0 %1905
    %v1907 = vadd.f32 %v1466, %v1468
    %1908 = vadd.xlane.f32.xlu0 %v1907
    %v1909 = vpop.xlane.xlu0 %1908
    %v1910 = vadd.f32 %v1470, %v1472
    %1911 = vadd.xlane.f32.xlu0 %v1910
    %v1912 = vpop.xlane.xlu0 %1911
    %v1913 = vadd.f32 %v1474, %v1476
    %1914 = vadd.xlane.f32.xlu0 %v1913
    %v1915 = vpop.xlane.xlu0 %1914
    %v1916 = vadd.f32 %v1478, %v1480
    %1917 = vadd.xlane.f32.xlu0 %v1916
    %v1918 = vpop.xlane.xlu0 %1917
    %v1919 = vadd.f32 %v1482, %v1484
    %1920 = vadd.xlane.f32.xlu0 %v1919
    %v1921 = vpop.xlane.xlu0 %1920
    %v1922 = vadd.f32 %v1486, %v1488
    %1923 = vadd.xlane.f32.xlu0 %v1922
    %v1924 = vpop.xlane.xlu0 %1923
    %v1925 = vadd.f32 %v1490, %v1492
    %1926 = vadd.xlane.f32.xlu0 %v1925
    %v1927 = vpop.xlane.xlu0 %1926
    %v1928 = vadd.f32 %v1494, %v1496
    %1929 = vadd.xlane.f32.xlu0 %v1928
    %v1930 = vpop.xlane.xlu0 %1929
    %v1931 = vadd.f32 %v1498, %v1500
    %1932 = vadd.xlane.f32.xlu0 %v1931
    %v1933 = vpop.xlane.xlu0 %1932
    %v1934 = vadd.f32 %v1502, %v1504
    %1935 = vadd.xlane.f32.xlu0 %v1934
    %v1936 = vpop.xlane.xlu0 %1935
    %v1937 = vadd.f32 %v1506, %v1508
    %1938 = vadd.xlane.f32.xlu0 %v1937
    %v1939 = vpop.xlane.xlu0 %1938
    %v1940 = vadd.f32 %v1510, %v1512
    %1941 = vadd.xlane.f32.xlu0 %v1940
    %v1942 = vpop.xlane.xlu0 %1941
    %v1943 = vadd.f32 %v1514, %v1516
    %1944 = vadd.xlane.f32.xlu0 %v1943
    %v1945 = vpop.xlane.xlu0 %1944
    %v1946 = vadd.f32 %v1518, %v1520
    %1947 = vadd.xlane.f32.xlu0 %v1946
    %v1948 = vpop.xlane.xlu0 %1947
    %v1949 = vadd.f32 %v1522, %v1524
    %1950 = vadd.xlane.f32.xlu0 %v1949
    %v1951 = vpop.xlane.xlu0 %1950
    %v1952 = vadd.f32 %v1526, %v1528
    %1953 = vadd.xlane.f32.xlu0 %v1952
    %v1954 = vpop.xlane.xlu0 %1953
    %v1955 = vadd.f32 %v1530, %v1532
    %1956 = vadd.xlane.f32.xlu0 %v1955
    %v1957 = vpop.xlane.xlu0 %1956
    %v1958 = vadd.f32 %v1534, %v1536
    %1959 = vadd.xlane.f32.xlu0 %v1958
    %v1960 = vpop.xlane.xlu0 %1959
    %v1961 = vadd.f32 %v1538, %v1540
    %1962 = vadd.xlane.f32.xlu0 %v1961
    %v1963 = vpop.xlane.xlu0 %1962
    %v1964 = vadd.f32 %v1542, %v1544
    %1965 = vadd.xlane.f32.xlu0 %v1964
    %v1966 = vpop.xlane.xlu0 %1965
    %v1967 = vadd.f32 %v1546, %v1548
    %1968 = vadd.xlane.f32.xlu0 %v1967
    %v1969 = vpop.xlane.xlu0 %1968
    %v1970 = vadd.f32 %v1550, %v1552
    %1971 = vadd.xlane.f32.xlu0 %v1970
    %v1972 = vpop.xlane.xlu0 %1971
    %v1973 = vadd.f32 %v1554, %v1556
    %1974 = vadd.xlane.f32.xlu0 %v1973
    %v1975 = vpop.xlane.xlu0 %1974
    %v1976 = vadd.f32 %v1558, %v1560
    %1977 = vadd.xlane.f32.xlu0 %v1976
    %v1978 = vpop.xlane.xlu0 %1977
    %v1979 = vadd.f32 %v1562, %v1564
    %1980 = vadd.xlane.f32.xlu0 %v1979
    %v1981 = vpop.xlane.xlu0 %1980
    %v1982 = vadd.f32 %v1566, %v1568
    %1983 = vadd.xlane.f32.xlu0 %v1982
    %v1984 = vpop.xlane.xlu0 %1983
    %v1985 = vadd.f32 %v1570, %v1572
    %1986 = vadd.xlane.f32.xlu0 %v1985
    %v1987 = vpop.xlane.xlu0 %1986
    %v1988 = vadd.f32 %v1574, %v1576
    %1989 = vadd.xlane.f32.xlu0 %v1988
    %v1990 = vpop.xlane.xlu0 %1989
    %v1991 = vadd.f32 %v1578, %v1580
    %1992 = vadd.xlane.f32.xlu0 %v1991
    %v1993 = vpop.xlane.xlu0 %1992
    %v1994 = vadd.f32 %v1582, %v1584
    %1995 = vadd.xlane.f32.xlu0 %v1994
    %v1996 = vpop.xlane.xlu0 %1995
    %v1997 = vadd.f32 %v1586, %v1588
    %1998 = vadd.xlane.f32.xlu0 %v1997
    %v1999 = vpop.xlane.xlu0 %1998
    %v2000 = vadd.f32 %v1590, %v1592
    %2001 = vadd.xlane.f32.xlu0 %v2000
    %v2002 = vpop.xlane.xlu0 %2001
    %v2003 = vadd.f32 %v1594, %v1596
    %2004 = vadd.xlane.f32.xlu0 %v2003
    %v2005 = vpop.xlane.xlu0 %2004
    %v2006 = vadd.f32 %v1598, %v1600
    %2007 = vadd.xlane.f32.xlu0 %v2006
    %v2008 = vpop.xlane.xlu0 %2007
    %v2009 = vadd.f32 %v1602, %v1604
    %2010 = vadd.xlane.f32.xlu0 %v2009
    %v2011 = vpop.xlane.xlu0 %2010
    %v2012 = vadd.f32 %v1606, %v1608
    %2013 = vadd.xlane.f32.xlu0 %v2012
    %v2014 = vpop.xlane.xlu0 %2013
    %v2015 = vadd.f32 %v1610, %v1612
    %2016 = vadd.xlane.f32.xlu0 %v2015
    %v2017 = vpop.xlane.xlu0 %2016
    %v2018 = vadd.f32 %v1614, %v1616
    %2019 = vadd.xlane.f32.xlu0 %v2018
    %v2020 = vpop.xlane.xlu0 %2019
    %v2021 = vadd.f32 %v1618, %v1620
    %2022 = vadd.xlane.f32.xlu0 %v2021
    %v2023 = vpop.xlane.xlu0 %2022
    %v2024 = vadd.f32 %v1622, %v1624
    %2025 = vadd.xlane.f32.xlu0 %v2024
    %v2026 = vpop.xlane.xlu0 %2025
    %v2027 = vadd.f32 %v1626, %v1628
    %2028 = vadd.xlane.f32.xlu0 %v2027
    %v2029 = vpop.xlane.xlu0 %2028
    %v2030 = vadd.f32 %v1630, %v1632
    %2031 = vadd.xlane.f32.xlu0 %v2030
    %v2032 = vpop.xlane.xlu0 %2031
    %v2033 = vadd.f32 %v1634, %v1636
    %2034 = vadd.xlane.f32.xlu0 %v2033
    %v2035 = vpop.xlane.xlu0 %2034
    %v2036 = vadd.f32 %v1638, %v1640
    %2037 = vadd.xlane.f32.xlu0 %v2036
    %v2038 = vpop.xlane.xlu0 %2037
    %v2039 = vadd.f32 %v1642, %v1644
    %2040 = vadd.xlane.f32.xlu0 %v2039
    %v2041 = vpop.xlane.xlu0 %2040
    %v2042 = vadd.f32 %v1646, %v1648
    %2043 = vadd.xlane.f32.xlu0 %v2042
    %v2044 = vpop.xlane.xlu0 %2043
    %v2045 = vadd.f32 %v1650, %v1652
    %2046 = vadd.xlane.f32.xlu0 %v2045
    %v2047 = vpop.xlane.xlu0 %2046
    %v2048 = vadd.f32 %v1654, %v1656
    %2049 = vadd.xlane.f32.xlu0 %v2048
    %v2050 = vpop.xlane.xlu0 %2049
    %v2051 = vadd.f32 %v1658, %v1660
    %2052 = vadd.xlane.f32.xlu0 %v2051
    %v2053 = vpop.xlane.xlu0 %2052
    %v2054 = vadd.f32 %v1662, %v1664
    %2055 = vadd.xlane.f32.xlu0 %v2054
    %v2056 = vpop.xlane.xlu0 %2055
    %v2057 = vadd.f32 %v1666, %v1668
    %2058 = vadd.xlane.f32.xlu0 %v2057
    %v2059 = vpop.xlane.xlu0 %2058
    %v2060 = vadd.f32 %v1670, %v1672
    %2061 = vadd.xlane.f32.xlu0 %v2060
    %v2062 = vpop.xlane.xlu0 %2061
    %v2063 = vadd.f32 %v1674, %v1676
    %2064 = vadd.xlane.f32.xlu0 %v2063
    %v2065 = vpop.xlane.xlu0 %2064
    %v2066 = vadd.f32 %v1678, %v1680
    %2067 = vadd.xlane.f32.xlu0 %v2066
    %v2068 = vpop.xlane.xlu0 %2067
    %v2069 = vadd.f32 %v1682, %v1684
    %2070 = vadd.xlane.f32.xlu0 %v2069
    %v2071 = vpop.xlane.xlu0 %2070
    %v2072 = vadd.f32 %v1686, %v1688
    %2073 = vadd.xlane.f32.xlu0 %v2072
    %v2074 = vpop.xlane.xlu0 %2073
    %v2075 = vadd.f32 %v1690, %v1692
    %2076 = vadd.xlane.f32.xlu0 %v2075
    %v2077 = vpop.xlane.xlu0 %2076
    %v2078 = vadd.f32 %v1694, %v1696
    %2079 = vadd.xlane.f32.xlu0 %v2078
    %v2080 = vpop.xlane.xlu0 %2079
    %v2081 = vrcp.pop %v1699
    %v2082 = vmul.f32 %v1186, %v2081
    %v2083 = vmul.f32 %v1188, %v2081
    %v2084 = vrcp.pop %v1702
    %v2085 = vmul.f32 %v1190, %v2084
    %v2086 = vmul.f32 %v1192, %v2084
    %v2087 = vrcp.pop %v1705
    %v2088 = vmul.f32 %v1194, %v2087
    %v2089 = vmul.f32 %v1196, %v2087
    %v2090 = vrcp.pop %v1708
    %v2091 = vmul.f32 %v1198, %v2090
    %v2092 = vmul.f32 %v1200, %v2090
    %v2093 = vrcp.pop %v1711
    %v2094 = vmul.f32 %v1202, %v2093
    %v2095 = vmul.f32 %v1204, %v2093
    %v2096 = vrcp.pop %v1714
    %v2097 = vmul.f32 %v1206, %v2096
    %v2098 = vmul.f32 %v1208, %v2096
    %v2099 = vrcp.pop %v1717
    %v2100 = vmul.f32 %v1210, %v2099
    %v2101 = vmul.f32 %v1212, %v2099
    %v2102 = vrcp.pop %v1720
    %v2103 = vmul.f32 %v1214, %v2102
    %v2104 = vmul.f32 %v1216, %v2102
    %v2105 = vrcp.pop %v1723
    %v2106 = vmul.f32 %v1218, %v2105
    %v2107 = vmul.f32 %v1220, %v2105
    %v2108 = vrcp.pop %v1726
    %v2109 = vmul.f32 %v1222, %v2108
    %v2110 = vmul.f32 %v1224, %v2108
    %v2111 = vrcp.pop %v1729
    %v2112 = vmul.f32 %v1226, %v2111
    %v2113 = vmul.f32 %v1228, %v2111
    %v2114 = vrcp.pop %v1732
    %v2115 = vmul.f32 %v1230, %v2114
    %v2116 = vmul.f32 %v1232, %v2114
    %v2117 = vrcp.pop %v1735
    %v2118 = vmul.f32 %v1234, %v2117
    %v2119 = vmul.f32 %v1236, %v2117
    %v2120 = vrcp.pop %v1738
    %v2121 = vmul.f32 %v1238, %v2120
    %v2122 = vmul.f32 %v1240, %v2120
    %v2123 = vrcp.pop %v1741
    %v2124 = vmul.f32 %v1242, %v2123
    %v2125 = vmul.f32 %v1244, %v2123
    %v2126 = vrcp.pop %v1744
    %v2127 = vmul.f32 %v1246, %v2126
    %v2128 = vmul.f32 %v1248, %v2126
    %v2129 = vrcp.pop %v1747
    %v2130 = vmul.f32 %v1250, %v2129
    %v2131 = vmul.f32 %v1252, %v2129
    %v2132 = vrcp.pop %v1750
    %v2133 = vmul.f32 %v1254, %v2132
    %v2134 = vmul.f32 %v1256, %v2132
    %v2135 = vrcp.pop %v1753
    %v2136 = vmul.f32 %v1258, %v2135
    %v2137 = vmul.f32 %v1260, %v2135
    %v2138 = vrcp.pop %v1756
    %v2139 = vmul.f32 %v1262, %v2138
    %v2140 = vmul.f32 %v1264, %v2138
    %v2141 = vrcp.pop %v1759
    %v2142 = vmul.f32 %v1266, %v2141
    %v2143 = vmul.f32 %v1268, %v2141
    %v2144 = vrcp.pop %v1762
    %v2145 = vmul.f32 %v1270, %v2144
    %v2146 = vmul.f32 %v1272, %v2144
    %v2147 = vrcp.pop %v1765
    %v2148 = vmul.f32 %v1274, %v2147
    %v2149 = vmul.f32 %v1276, %v2147
    %v2150 = vrcp.pop %v1768
    %v2151 = vmul.f32 %v1278, %v2150
    %v2152 = vmul.f32 %v1280, %v2150
    %v2153 = vrcp.pop %v1771
    %v2154 = vmul.f32 %v1282, %v2153
    %v2155 = vmul.f32 %v1284, %v2153
    %v2156 = vrcp.pop %v1774
    %v2157 = vmul.f32 %v1286, %v2156
    %v2158 = vmul.f32 %v1288, %v2156
    %v2159 = vrcp.pop %v1777
    %v2160 = vmul.f32 %v1290, %v2159
    %v2161 = vmul.f32 %v1292, %v2159
    %v2162 = vrcp.pop %v1780
    %v2163 = vmul.f32 %v1294, %v2162
    %v2164 = vmul.f32 %v1296, %v2162
    %v2165 = vrcp.pop %v1783
    %v2166 = vmul.f32 %v1298, %v2165
    %v2167 = vmul.f32 %v1300, %v2165
    %v2168 = vrcp.pop %v1786
    %v2169 = vmul.f32 %v1302, %v2168
    %v2170 = vmul.f32 %v1304, %v2168
    %v2171 = vrcp.pop %v1789
    %v2172 = vmul.f32 %v1306, %v2171
    %v2173 = vmul.f32 %v1308, %v2171
    %v2174 = vrcp.pop %v1792
    %v2175 = vmul.f32 %v1310, %v2174
    %v2176 = vmul.f32 %v1312, %v2174
    %v2177 = vrcp.pop %v1795
    %v2178 = vmul.f32 %v1314, %v2177
    %v2179 = vmul.f32 %v1316, %v2177
    %v2180 = vrcp.pop %v1798
    %v2181 = vmul.f32 %v1318, %v2180
    %v2182 = vmul.f32 %v1320, %v2180
    %v2183 = vrcp.pop %v1801
    %v2184 = vmul.f32 %v1322, %v2183
    %v2185 = vmul.f32 %v1324, %v2183
    %v2186 = vrcp.pop %v1804
    %v2187 = vmul.f32 %v1326, %v2186
    %v2188 = vmul.f32 %v1328, %v2186
    %v2189 = vrcp.pop %v1807
    %v2190 = vmul.f32 %v1330, %v2189
    %v2191 = vmul.f32 %v1332, %v2189
    %v2192 = vrcp.pop %v1810
    %v2193 = vmul.f32 %v1334, %v2192
    %v2194 = vmul.f32 %v1336, %v2192
    %v2195 = vrcp.pop %v1813
    %v2196 = vmul.f32 %v1338, %v2195
    %v2197 = vmul.f32 %v1340, %v2195
    %v2198 = vrcp.pop %v1816
    %v2199 = vmul.f32 %v1342, %v2198
    %v2200 = vmul.f32 %v1344, %v2198
    %v2201 = vrcp.pop %v1819
    %v2202 = vmul.f32 %v1346, %v2201
    %v2203 = vmul.f32 %v1348, %v2201
    %v2204 = vrcp.pop %v1822
    %v2205 = vmul.f32 %v1350, %v2204
    %v2206 = vmul.f32 %v1352, %v2204
    %v2207 = vrcp.pop %v1825
    %v2208 = vmul.f32 %v1354, %v2207
    %v2209 = vmul.f32 %v1356, %v2207
    %v2210 = vrcp.pop %v1828
    %v2211 = vmul.f32 %v1358, %v2210
    %v2212 = vmul.f32 %v1360, %v2210
    %v2213 = vrcp.pop %v1831
    %v2214 = vmul.f32 %v1362, %v2213
    %v2215 = vmul.f32 %v1364, %v2213
    %v2216 = vrcp.pop %v1834
    %v2217 = vmul.f32 %v1366, %v2216
    %v2218 = vmul.f32 %v1368, %v2216
    %v2219 = vrcp.pop %v1837
    %v2220 = vmul.f32 %v1370, %v2219
    %v2221 = vmul.f32 %v1372, %v2219
    %v2222 = vrcp.pop %v1840
    %v2223 = vmul.f32 %v1374, %v2222
    %v2224 = vmul.f32 %v1376, %v2222
    %v2225 = vrcp.pop %v1843
    %v2226 = vmul.f32 %v1378, %v2225
    %v2227 = vmul.f32 %v1380, %v2225
    %v2228 = vrcp.pop %v1846
    %v2229 = vmul.f32 %v1382, %v2228
    %v2230 = vmul.f32 %v1384, %v2228
    %v2231 = vrcp.pop %v1849
    %v2232 = vmul.f32 %v1386, %v2231
    %v2233 = vmul.f32 %v1388, %v2231
    %v2234 = vrcp.pop %v1852
    %v2235 = vmul.f32 %v1390, %v2234
    %v2236 = vmul.f32 %v1392, %v2234
    %v2237 = vrcp.pop %v1855
    %v2238 = vmul.f32 %v1394, %v2237
    %v2239 = vmul.f32 %v1396, %v2237
    %v2240 = vrcp.pop %v1858
    %v2241 = vmul.f32 %v1398, %v2240
    %v2242 = vmul.f32 %v1400, %v2240
    %v2243 = vrcp.pop %v1861
    %v2244 = vmul.f32 %v1402, %v2243
    %v2245 = vmul.f32 %v1404, %v2243
    %v2246 = vrcp.pop %v1864
    %v2247 = vmul.f32 %v1406, %v2246
    %v2248 = vmul.f32 %v1408, %v2246
    %v2249 = vrcp.pop %v1867
    %v2250 = vmul.f32 %v1410, %v2249
    %v2251 = vmul.f32 %v1412, %v2249
    %v2252 = vrcp.pop %v1870
    %v2253 = vmul.f32 %v1414, %v2252
    %v2254 = vmul.f32 %v1416, %v2252
    %v2255 = vrcp.pop %v1873
    %v2256 = vmul.f32 %v1418, %v2255
    %v2257 = vmul.f32 %v1420, %v2255
    %v2258 = vrcp.pop %v1876
    %v2259 = vmul.f32 %v1422, %v2258
    %v2260 = vmul.f32 %v1424, %v2258
    %v2261 = vrcp.pop %v1879
    %v2262 = vmul.f32 %v1426, %v2261
    %v2263 = vmul.f32 %v1428, %v2261
    %v2264 = vrcp.pop %v1882
    %v2265 = vmul.f32 %v1430, %v2264
    %v2266 = vmul.f32 %v1432, %v2264
    %v2267 = vrcp.pop %v1885
    %v2268 = vmul.f32 %v1434, %v2267
    %v2269 = vmul.f32 %v1436, %v2267
    %v2270 = vrcp.pop %v1888
    %v2271 = vmul.f32 %v1438, %v2270
    %v2272 = vmul.f32 %v1440, %v2270
    %v2273 = vrcp.pop %v1891
    %v2274 = vmul.f32 %v1442, %v2273
    %v2275 = vmul.f32 %v1444, %v2273
    %v2276 = vrcp.pop %v1894
    %v2277 = vmul.f32 %v1446, %v2276
    %v2278 = vmul.f32 %v1448, %v2276
    %v2279 = vrcp.pop %v1897
    %v2280 = vmul.f32 %v1450, %v2279
    %v2281 = vmul.f32 %v1452, %v2279
    %v2282 = vrcp.pop %v1900
    %v2283 = vmul.f32 %v1454, %v2282
    %v2284 = vmul.f32 %v1456, %v2282
    %v2285 = vrcp.pop %v1903
    %v2286 = vmul.f32 %v1458, %v2285
    %v2287 = vmul.f32 %v1460, %v2285
    %v2288 = vrcp.pop %v1906
    %v2289 = vmul.f32 %v1462, %v2288
    %v2290 = vmul.f32 %v1464, %v2288
    %v2291 = vrcp.pop %v1909
    %v2292 = vmul.f32 %v1466, %v2291
    %v2293 = vmul.f32 %v1468, %v2291
    %v2294 = vrcp.pop %v1912
    %v2295 = vmul.f32 %v1470, %v2294
    %v2296 = vmul.f32 %v1472, %v2294
    %v2297 = vrcp.pop %v1915
    %v2298 = vmul.f32 %v1474, %v2297
    %v2299 = vmul.f32 %v1476, %v2297
    %v2300 = vrcp.pop %v1918
    %v2301 = vmul.f32 %v1478, %v2300
    %v2302 = vmul.f32 %v1480, %v2300
    %v2303 = vrcp.pop %v1921
    %v2304 = vmul.f32 %v1482, %v2303
    %v2305 = vmul.f32 %v1484, %v2303
    %v2306 = vrcp.pop %v1924
    %v2307 = vmul.f32 %v1486, %v2306
    %v2308 = vmul.f32 %v1488, %v2306
    %v2309 = vrcp.pop %v1927
    %v2310 = vmul.f32 %v1490, %v2309
    %v2311 = vmul.f32 %v1492, %v2309
    %v2312 = vrcp.pop %v1930
    %v2313 = vmul.f32 %v1494, %v2312
    %v2314 = vmul.f32 %v1496, %v2312
    %v2315 = vrcp.pop %v1933
    %v2316 = vmul.f32 %v1498, %v2315
    %v2317 = vmul.f32 %v1500, %v2315
    %v2318 = vrcp.pop %v1936
    %v2319 = vmul.f32 %v1502, %v2318
    %v2320 = vmul.f32 %v1504, %v2318
    %v2321 = vrcp.pop %v1939
    %v2322 = vmul.f32 %v1506, %v2321
    %v2323 = vmul.f32 %v1508, %v2321
    %v2324 = vrcp.pop %v1942
    %v2325 = vmul.f32 %v1510, %v2324
    %v2326 = vmul.f32 %v1512, %v2324
    %v2327 = vrcp.pop %v1945
    %v2328 = vmul.f32 %v1514, %v2327
    %v2329 = vmul.f32 %v1516, %v2327
    %v2330 = vrcp.pop %v1948
    %v2331 = vmul.f32 %v1518, %v2330
    %v2332 = vmul.f32 %v1520, %v2330
    %v2333 = vrcp.pop %v1951
    %v2334 = vmul.f32 %v1522, %v2333
    %v2335 = vmul.f32 %v1524, %v2333
    %v2336 = vrcp.pop %v1954
    %v2337 = vmul.f32 %v1526, %v2336
    %v2338 = vmul.f32 %v1528, %v2336
    %v2339 = vrcp.pop %v1957
    %v2340 = vmul.f32 %v1530, %v2339
    %v2341 = vmul.f32 %v1532, %v2339
    %v2342 = vrcp.pop %v1960
    %v2343 = vmul.f32 %v1534, %v2342
    %v2344 = vmul.f32 %v1536, %v2342
    %v2345 = vrcp.pop %v1963
    %v2346 = vmul.f32 %v1538, %v2345
    %v2347 = vmul.f32 %v1540, %v2345
    %v2348 = vrcp.pop %v1966
    %v2349 = vmul.f32 %v1542, %v2348
    %v2350 = vmul.f32 %v1544, %v2348
    %v2351 = vrcp.pop %v1969
    %v2352 = vmul.f32 %v1546, %v2351
    %v2353 = vmul.f32 %v1548, %v2351
    %v2354 = vrcp.pop %v1972
    %v2355 = vmul.f32 %v1550, %v2354
    %v2356 = vmul.f32 %v1552, %v2354
    %v2357 = vrcp.pop %v1975
    %v2358 = vmul.f32 %v1554, %v2357
    %v2359 = vmul.f32 %v1556, %v2357
    %v2360 = vrcp.pop %v1978
    %v2361 = vmul.f32 %v1558, %v2360
    %v2362 = vmul.f32 %v1560, %v2360
    %v2363 = vrcp.pop %v1981
    %v2364 = vmul.f32 %v1562, %v2363
    %v2365 = vmul.f32 %v1564, %v2363
    %v2366 = vrcp.pop %v1984
    %v2367 = vmul.f32 %v1566, %v2366
    %v2368 = vmul.f32 %v1568, %v2366
    %v2369 = vrcp.pop %v1987
    %v2370 = vmul.f32 %v1570, %v2369
    %v2371 = vmul.f32 %v1572, %v2369
    %v2372 = vrcp.pop %v1990
    %v2373 = vmul.f32 %v1574, %v2372
    %v2374 = vmul.f32 %v1576, %v2372
    %v2375 = vrcp.pop %v1993
    %v2376 = vmul.f32 %v1578, %v2375
    %v2377 = vmul.f32 %v1580, %v2375
    %v2378 = vrcp.pop %v1996
    %v2379 = vmul.f32 %v1582, %v2378
    %v2380 = vmul.f32 %v1584, %v2378
    %v2381 = vrcp.pop %v1999
    %v2382 = vmul.f32 %v1586, %v2381
    %v2383 = vmul.f32 %v1588, %v2381
    %v2384 = vrcp.pop %v2002
    %v2385 = vmul.f32 %v1590, %v2384
    %v2386 = vmul.f32 %v1592, %v2384
    %v2387 = vrcp.pop %v2005
    %v2388 = vmul.f32 %v1594, %v2387
    %v2389 = vmul.f32 %v1596, %v2387
    %v2390 = vrcp.pop %v2008
    %v2391 = vmul.f32 %v1598, %v2390
    %v2392 = vmul.f32 %v1600, %v2390
    %v2393 = vrcp.pop %v2011
    %v2394 = vmul.f32 %v1602, %v2393
    %v2395 = vmul.f32 %v1604, %v2393
    %v2396 = vrcp.pop %v2014
    %v2397 = vmul.f32 %v1606, %v2396
    %v2398 = vmul.f32 %v1608, %v2396
    %v2399 = vrcp.pop %v2017
    %v2400 = vmul.f32 %v1610, %v2399
    %v2401 = vmul.f32 %v1612, %v2399
    %v2402 = vrcp.pop %v2020
    %v2403 = vmul.f32 %v1614, %v2402
    %v2404 = vmul.f32 %v1616, %v2402
    %v2405 = vrcp.pop %v2023
    %v2406 = vmul.f32 %v1618, %v2405
    %v2407 = vmul.f32 %v1620, %v2405
    %v2408 = vrcp.pop %v2026
    %v2409 = vmul.f32 %v1622, %v2408
    %v2410 = vmul.f32 %v1624, %v2408
    %v2411 = vrcp.pop %v2029
    %v2412 = vmul.f32 %v1626, %v2411
    %v2413 = vmul.f32 %v1628, %v2411
    %v2414 = vrcp.pop %v2032
    %v2415 = vmul.f32 %v1630, %v2414
    %v2416 = vmul.f32 %v1632, %v2414
    %v2417 = vrcp.pop %v2035
    %v2418 = vmul.f32 %v1634, %v2417
    %v2419 = vmul.f32 %v1636, %v2417
    %v2420 = vrcp.pop %v2038
    %v2421 = vmul.f32 %v1638, %v2420
    %v2422 = vmul.f32 %v1640, %v2420
    %v2423 = vrcp.pop %v2041
    %v2424 = vmul.f32 %v1642, %v2423
    %v2425 = vmul.f32 %v1644, %v2423
    %v2426 = vrcp.pop %v2044
    %v2427 = vmul.f32 %v1646, %v2426
    %v2428 = vmul.f32 %v1648, %v2426
    %v2429 = vrcp.pop %v2047
    %v2430 = vmul.f32 %v1650, %v2429
    %v2431 = vmul.f32 %v1652, %v2429
    %v2432 = vrcp.pop %v2050
    %v2433 = vmul.f32 %v1654, %v2432
    %v2434 = vmul.f32 %v1656, %v2432
    %v2435 = vrcp.pop %v2053
    %v2436 = vmul.f32 %v1658, %v2435
    %v2437 = vmul.f32 %v1660, %v2435
    %v2438 = vrcp.pop %v2056
    %v2439 = vmul.f32 %v1662, %v2438
    %v2440 = vmul.f32 %v1664, %v2438
    %v2441 = vrcp.pop %v2059
    %v2442 = vmul.f32 %v1666, %v2441
    %v2443 = vmul.f32 %v1668, %v2441
    %v2444 = vrcp.pop %v2062
    %v2445 = vmul.f32 %v1670, %v2444
    %v2446 = vmul.f32 %v1672, %v2444
    %v2447 = vrcp.pop %v2065
    %v2448 = vmul.f32 %v1674, %v2447
    %v2449 = vmul.f32 %v1676, %v2447
    %v2450 = vrcp.pop %v2068
    %v2451 = vmul.f32 %v1678, %v2450
    %v2452 = vmul.f32 %v1680, %v2450
    %v2453 = vrcp.pop %v2071
    %v2454 = vmul.f32 %v1682, %v2453
    %v2455 = vmul.f32 %v1684, %v2453
    %v2456 = vrcp.pop %v2074
    %v2457 = vmul.f32 %v1686, %v2456
    %v2458 = vmul.f32 %v1688, %v2456
    %v2459 = vrcp.pop %v2077
    %v2460 = vmul.f32 %v1690, %v2459
    %v2461 = vmul.f32 %v1692, %v2459
    %v2462 = vrcp.pop %v2080
    %v2463 = vmul.f32 %v1694, %v2462
    %v2464 = vmul.f32 %v1696, %v2462
    %v2465 = vadd.f32 %v2082, %v2085
    %v2466 = vadd.f32 %v2465, %v2088
    %v2467 = vadd.f32 %v2466, %v2091
    %v2468 = vadd.f32 %v2467, %v2094
    %v2469 = vadd.f32 %v2468, %v2097
    %v2470 = vadd.f32 %v2469, %v2100
    %v2471 = vadd.f32 %v2470, %v2103
    %v2472 = vadd.f32 %v2471, %v2106
    %v2473 = vadd.f32 %v2472, %v2109
    %v2474 = vadd.f32 %v2473, %v2112
    %v2475 = vadd.f32 %v2474, %v2115
    %v2476 = vadd.f32 %v2475, %v2118
    %v2477 = vadd.f32 %v2476, %v2121
    %v2478 = vadd.f32 %v2477, %v2124
    %v2479 = vadd.f32 %v2478, %v2127
    %v2480 = vadd.f32 %v2479, %v2130
    %v2481 = vadd.f32 %v2480, %v2133
    %v2482 = vadd.f32 %v2481, %v2136
    %v2483 = vadd.f32 %v2482, %v2139
    %v2484 = vadd.f32 %v2483, %v2142
    %v2485 = vadd.f32 %v2484, %v2145
    %v2486 = vadd.f32 %v2485, %v2148
    %v2487 = vadd.f32 %v2486, %v2151
    %v2488 = vadd.f32 %v2487, %v2154
    %v2489 = vadd.f32 %v2488, %v2157
    %v2490 = vadd.f32 %v2489, %v2160
    %v2491 = vadd.f32 %v2490, %v2163
    %v2492 = vadd.f32 %v2491, %v2166
    %v2493 = vadd.f32 %v2492, %v2169
    %v2494 = vadd.f32 %v2493, %v2172
    %v2495 = vadd.f32 %v2494, %v2175
    %v2496 = vadd.f32 %v2495, %v2178
    %v2497 = vadd.f32 %v2496, %v2181
    %v2498 = vadd.f32 %v2497, %v2184
    %v2499 = vadd.f32 %v2498, %v2187
    %v2500 = vadd.f32 %v2499, %v2190
    %v2501 = vadd.f32 %v2500, %v2193
    %v2502 = vadd.f32 %v2501, %v2196
    %v2503 = vadd.f32 %v2502, %v2199
    %v2504 = vadd.f32 %v2503, %v2202
    %v2505 = vadd.f32 %v2504, %v2205
    %v2506 = vadd.f32 %v2505, %v2208
    %v2507 = vadd.f32 %v2506, %v2211
    %v2508 = vadd.f32 %v2507, %v2214
    %v2509 = vadd.f32 %v2508, %v2217
    %v2510 = vadd.f32 %v2509, %v2220
    %v2511 = vadd.f32 %v2510, %v2223
    %v2512 = vadd.f32 %v2511, %v2226
    %v2513 = vadd.f32 %v2512, %v2229
    %v2514 = vadd.f32 %v2513, %v2232
    %v2515 = vadd.f32 %v2514, %v2235
    %v2516 = vadd.f32 %v2515, %v2238
    %v2517 = vadd.f32 %v2516, %v2241
    %v2518 = vadd.f32 %v2517, %v2244
    %v2519 = vadd.f32 %v2518, %v2247
    %v2520 = vadd.f32 %v2519, %v2250
    %v2521 = vadd.f32 %v2520, %v2253
    %v2522 = vadd.f32 %v2521, %v2256
    %v2523 = vadd.f32 %v2522, %v2259
    %v2524 = vadd.f32 %v2523, %v2262
    %v2525 = vadd.f32 %v2524, %v2265
    %v2526 = vadd.f32 %v2525, %v2268
    %v2527 = vadd.f32 %v2526, %v2271
    %v2528 = vadd.f32 %v2527, %v2274
    %v2529 = vadd.f32 %v2528, %v2277
    %v2530 = vadd.f32 %v2529, %v2280
    %v2531 = vadd.f32 %v2530, %v2283
    %v2532 = vadd.f32 %v2531, %v2286
    %v2533 = vadd.f32 %v2532, %v2289
    %v2534 = vadd.f32 %v2533, %v2292
    %v2535 = vadd.f32 %v2534, %v2295
    %v2536 = vadd.f32 %v2535, %v2298
    %v2537 = vadd.f32 %v2536, %v2301
    %v2538 = vadd.f32 %v2537, %v2304
    %v2539 = vadd.f32 %v2538, %v2307
    %v2540 = vadd.f32 %v2539, %v2310
    %v2541 = vadd.f32 %v2540, %v2313
    %v2542 = vadd.f32 %v2541, %v2316
    %v2543 = vadd.f32 %v2542, %v2319
    %v2544 = vadd.f32 %v2543, %v2322
    %v2545 = vadd.f32 %v2544, %v2325
    %v2546 = vadd.f32 %v2545, %v2328
    %v2547 = vadd.f32 %v2546, %v2331
    %v2548 = vadd.f32 %v2547, %v2334
    %v2549 = vadd.f32 %v2548, %v2337
    %v2550 = vadd.f32 %v2549, %v2340
    %v2551 = vadd.f32 %v2550, %v2343
    %v2552 = vadd.f32 %v2551, %v2346
    %v2553 = vadd.f32 %v2552, %v2349
    %v2554 = vadd.f32 %v2553, %v2352
    %v2555 = vadd.f32 %v2554, %v2355
    %v2556 = vadd.f32 %v2555, %v2358
    %v2557 = vadd.f32 %v2556, %v2361
    %v2558 = vadd.f32 %v2557, %v2364
    %v2559 = vadd.f32 %v2558, %v2367
    %v2560 = vadd.f32 %v2559, %v2370
    %v2561 = vadd.f32 %v2560, %v2373
    %v2562 = vadd.f32 %v2561, %v2376
    %v2563 = vadd.f32 %v2562, %v2379
    %v2564 = vadd.f32 %v2563, %v2382
    %v2565 = vadd.f32 %v2564, %v2385
    %v2566 = vadd.f32 %v2565, %v2388
    %v2567 = vadd.f32 %v2566, %v2391
    %v2568 = vadd.f32 %v2567, %v2394
    %v2569 = vadd.f32 %v2568, %v2397
    %v2570 = vadd.f32 %v2569, %v2400
    %v2571 = vadd.f32 %v2570, %v2403
    %v2572 = vadd.f32 %v2571, %v2406
    %v2573 = vadd.f32 %v2572, %v2409
    %v2574 = vadd.f32 %v2573, %v2412
    %v2575 = vadd.f32 %v2574, %v2415
    %v2576 = vadd.f32 %v2575, %v2418
    %v2577 = vadd.f32 %v2576, %v2421
    %v2578 = vadd.f32 %v2577, %v2424
    %v2579 = vadd.f32 %v2578, %v2427
    %v2580 = vadd.f32 %v2579, %v2430
    %v2581 = vadd.f32 %v2580, %v2433
    %v2582 = vadd.f32 %v2581, %v2436
    %v2583 = vadd.f32 %v2582, %v2439
    %v2584 = vadd.f32 %v2583, %v2442
    %v2585 = vadd.f32 %v2584, %v2445
    %v2586 = vadd.f32 %v2585, %v2448
    %v2587 = vadd.f32 %v2586, %v2451
    %v2588 = vadd.f32 %v2587, %v2454
    %v2589 = vadd.f32 %v2588, %v2457
    %v2590 = vadd.f32 %v2589, %v2460
    %v2591 = vadd.f32 %v2590, %v2463
    %v2592 = vrot.slane %v2591, 4
    %v2593 = vadd.f32 %v2591, %v2592
    %v2594 = vrot.slane %v2593, 2
    %v2595 = vadd.f32 %v2593, %v2594
    %v2596 = vrot.slane %v2595, 1
    %v2597 = vadd.f32 %v2595, %v2596
    %v2598 = vadd.f32 %v2083, %v2086
    %v2599 = vadd.f32 %v2598, %v2089
    %v2600 = vadd.f32 %v2599, %v2092
    %v2601 = vadd.f32 %v2600, %v2095
    %v2602 = vadd.f32 %v2601, %v2098
    %v2603 = vadd.f32 %v2602, %v2101
    %v2604 = vadd.f32 %v2603, %v2104
    %v2605 = vadd.f32 %v2604, %v2107
    %v2606 = vadd.f32 %v2605, %v2110
    %v2607 = vadd.f32 %v2606, %v2113
    %v2608 = vadd.f32 %v2607, %v2116
    %v2609 = vadd.f32 %v2608, %v2119
    %v2610 = vadd.f32 %v2609, %v2122
    %v2611 = vadd.f32 %v2610, %v2125
    %v2612 = vadd.f32 %v2611, %v2128
    %v2613 = vadd.f32 %v2612, %v2131
    %v2614 = vadd.f32 %v2613, %v2134
    %v2615 = vadd.f32 %v2614, %v2137
    %v2616 = vadd.f32 %v2615, %v2140
    %v2617 = vadd.f32 %v2616, %v2143
    %v2618 = vadd.f32 %v2617, %v2146
    %v2619 = vadd.f32 %v2618, %v2149
    %v2620 = vadd.f32 %v2619, %v2152
    %v2621 = vadd.f32 %v2620, %v2155
    %v2622 = vadd.f32 %v2621, %v2158
    %v2623 = vadd.f32 %v2622, %v2161
    %v2624 = vadd.f32 %v2623, %v2164
    %v2625 = vadd.f32 %v2624, %v2167
    %v2626 = vadd.f32 %v2625, %v2170
    %v2627 = vadd.f32 %v2626, %v2173
    %v2628 = vadd.f32 %v2627, %v2176
    %v2629 = vadd.f32 %v2628, %v2179
    %v2630 = vadd.f32 %v2629, %v2182
    %v2631 = vadd.f32 %v2630, %v2185
    %v2632 = vadd.f32 %v2631, %v2188
    %v2633 = vadd.f32 %v2632, %v2191
    %v2634 = vadd.f32 %v2633, %v2194
    %v2635 = vadd.f32 %v2634, %v2197
    %v2636 = vadd.f32 %v2635, %v2200
    %v2637 = vadd.f32 %v2636, %v2203
    %v2638 = vadd.f32 %v2637, %v2206
    %v2639 = vadd.f32 %v2638, %v2209
    %v2640 = vadd.f32 %v2639, %v2212
    %v2641 = vadd.f32 %v2640, %v2215
    %v2642 = vadd.f32 %v2641, %v2218
    %v2643 = vadd.f32 %v2642, %v2221
    %v2644 = vadd.f32 %v2643, %v2224
    %v2645 = vadd.f32 %v2644, %v2227
    %v2646 = vadd.f32 %v2645, %v2230
    %v2647 = vadd.f32 %v2646, %v2233
    %v2648 = vadd.f32 %v2647, %v2236
    %v2649 = vadd.f32 %v2648, %v2239
    %v2650 = vadd.f32 %v2649, %v2242
    %v2651 = vadd.f32 %v2650, %v2245
    %v2652 = vadd.f32 %v2651, %v2248
    %v2653 = vadd.f32 %v2652, %v2251
    %v2654 = vadd.f32 %v2653, %v2254
    %v2655 = vadd.f32 %v2654, %v2257
    %v2656 = vadd.f32 %v2655, %v2260
    %v2657 = vadd.f32 %v2656, %v2263
    %v2658 = vadd.f32 %v2657, %v2266
    %v2659 = vadd.f32 %v2658, %v2269
    %v2660 = vadd.f32 %v2659, %v2272
    %v2661 = vadd.f32 %v2660, %v2275
    %v2662 = vadd.f32 %v2661, %v2278
    %v2663 = vadd.f32 %v2662, %v2281
    %v2664 = vadd.f32 %v2663, %v2284
    %v2665 = vadd.f32 %v2664, %v2287
    %v2666 = vadd.f32 %v2665, %v2290
    %v2667 = vadd.f32 %v2666, %v2293
    %v2668 = vadd.f32 %v2667, %v2296
    %v2669 = vadd.f32 %v2668, %v2299
    %v2670 = vadd.f32 %v2669, %v2302
    %v2671 = vadd.f32 %v2670, %v2305
    %v2672 = vadd.f32 %v2671, %v2308
    %v2673 = vadd.f32 %v2672, %v2311
    %v2674 = vadd.f32 %v2673, %v2314
    %v2675 = vadd.f32 %v2674, %v2317
    %v2676 = vadd.f32 %v2675, %v2320
    %v2677 = vadd.f32 %v2676, %v2323
    %v2678 = vadd.f32 %v2677, %v2326
    %v2679 = vadd.f32 %v2678, %v2329
    %v2680 = vadd.f32 %v2679, %v2332
    %v2681 = vadd.f32 %v2680, %v2335
    %v2682 = vadd.f32 %v2681, %v2338
    %v2683 = vadd.f32 %v2682, %v2341
    %v2684 = vadd.f32 %v2683, %v2344
    %v2685 = vadd.f32 %v2684, %v2347
    %v2686 = vadd.f32 %v2685, %v2350
    %v2687 = vadd.f32 %v2686, %v2353
    %v2688 = vadd.f32 %v2687, %v2356
    %v2689 = vadd.f32 %v2688, %v2359
    %v2690 = vadd.f32 %v2689, %v2362
    %v2691 = vadd.f32 %v2690, %v2365
    %v2692 = vadd.f32 %v2691, %v2368
    %v2693 = vadd.f32 %v2692, %v2371
    %v2694 = vadd.f32 %v2693, %v2374
    %v2695 = vadd.f32 %v2694, %v2377
    %v2696 = vadd.f32 %v2695, %v2380
    %v2697 = vadd.f32 %v2696, %v2383
    %v2698 = vadd.f32 %v2697, %v2386
    %v2699 = vadd.f32 %v2698, %v2389
    %v2700 = vadd.f32 %v2699, %v2392
    %v2701 = vadd.f32 %v2700, %v2395
    %v2702 = vadd.f32 %v2701, %v2398
    %v2703 = vadd.f32 %v2702, %v2401
    %v2704 = vadd.f32 %v2703, %v2404
    %v2705 = vadd.f32 %v2704, %v2407
    %v2706 = vadd.f32 %v2705, %v2410
    %v2707 = vadd.f32 %v2706, %v2413
    %v2708 = vadd.f32 %v2707, %v2416
    %v2709 = vadd.f32 %v2708, %v2419
    %v2710 = vadd.f32 %v2709, %v2422
    %v2711 = vadd.f32 %v2710, %v2425
    %v2712 = vadd.f32 %v2711, %v2428
    %v2713 = vadd.f32 %v2712, %v2431
    %v2714 = vadd.f32 %v2713, %v2434
    %v2715 = vadd.f32 %v2714, %v2437
    %v2716 = vadd.f32 %v2715, %v2440
    %v2717 = vadd.f32 %v2716, %v2443
    %v2718 = vadd.f32 %v2717, %v2446
    %v2719 = vadd.f32 %v2718, %v2449
    %v2720 = vadd.f32 %v2719, %v2452
    %v2721 = vadd.f32 %v2720, %v2455
    %v2722 = vadd.f32 %v2721, %v2458
    %v2723 = vadd.f32 %v2722, %v2461
    %v2724 = vadd.f32 %v2723, %v2464
    %v2725 = vrot.slane %v2724, 4
    %v2726 = vadd.f32 %v2724, %v2725
    %v2727 = vrot.slane %v2726, 2
    %v2728 = vadd.f32 %v2726, %v2727
    %v2729 = vrot.slane %v2728, 1
    %v2730 = vadd.f32 %v2728, %v2729
    %p2731 = scmp.eq.s32.totalorder 0, 0
    // Predicated region
    $region10: #{diversity_loss.1} parent=1 // pred_check
      %p2732 = pneg %p2731
    $region11: #{diversity_loss.1} parent=1 // pred_check_branch
      %2734 = sbr.rel (%p2732) target = $region13
    $region12: #{diversity_loss.1} parent=1 // pred_region
      %v2735 = vlaneseq
      %vm2736 = vcmp.ge.s32.totalorder %v2735, 0
      %vm2737 = vcmp.lt.s32.totalorder %v2735, 256
      %vm2738 = vmand %vm2736, %vm2737
      %2739 = vst.msk [vmem:[%s1] sm:$0x3] %vm2738, 0.0
    $region13: #{diversity_loss.1} parent=1 // pred_fallthru
      _
    %v2740 = vld [vmem:[%s1] sm:$0x3]
    %v2743 = vcombine.low %v2597, %v2730
    %v2745 = vunpack.c.l.s4 1966171168
    %v2746 = vunpack.c.0.s8 %v2745
    %v2747 = vlaneseq
    %v2748 = vshrl.u32 %v2747, 7
    %v2749 = vsub.s32 %v2746, %v2748
    %v2750 = vrot.slane %v2743, %v2749
    %v2752 = vunpack.c.l.s4 1966171168
    %v2753 = vunpack.c.0.s8 %v2752
    %v2754 = vlaneseq
    %v2755 = vshrl.u32 %v2754, 7
    %v2756 = vsub.s32 %v2753, %v2755
    %v2757 = vrot.slane %v2750, %v2756
    %v2759 = vadd.f32 %v2740, %v2757
    %v2760 = vlaneseq
    %vm2761 = vcmp.ge.s32.totalorder %v2760, 0
    %vm2762 = vcmp.lt.s32.totalorder %v2760, 256
    %vm2763 = vmand %vm2761, %vm2762
    %2764 = vst.msk [vmem:[%s1] sm:$0x3] %vm2763, %v2759
    // Predicated region
    $region14: #{diversity_loss.1} parent=1 // pred_check
      _
    $region15: #{diversity_loss.1} parent=1 // pred_check_branch
      %2766 = sbr.rel (0) target = $region17
    $region16: #{diversity_loss.1} parent=1 // pred_region
      _
    $region17: #{diversity_loss.1} parent=1 // pred_fallthru
      _
    // Predicated region
    $region18: #{diversity_loss.1} parent=1 // pred_check
      _
    $region19: #{diversity_loss.1} parent=1 // pred_check_branch
      %2768 = sbr.rel (0) target = $region21
    $region20: #{diversity_loss.1} parent=1 // pred_region
      _
    $region21: #{diversity_loss.1} parent=1 // pred_fallthru
      _
    %2769 = vsyncpa [#allocation3], 1

</llo_original>
